<compile_context>
chip_gen: v7x
topology: tpu7x:2x2x1
jax: 0.10.0
libtpu: 0.0.40
codegen_flags: <defaults>
</compile_context>

<pallas_src>
import jax
import jax.numpy as jnp
from jax.experimental import pallas as pl
from jax.experimental.pallas import tpu as pltpu


def _round_up(x, m):
    return ((x + m - 1) // m) * m


def _vmem_limit_bytes():
    # Generation-aware scoped-VMEM budget: ~3/4 of physical, capped at 100 MiB
    # (v5e/v6e: 96 MiB; v7x: 48 MiB).  Falls back to a safe 48 MiB.
    try:
        cap = int(pltpu.get_tpu_info().vmem_capacity_bytes)
    except Exception:
        cap = 64 * 1024 * 1024
    return int(min(100 * 1024 * 1024, (cap * 3) // 4))


# ----------------------------- Pallas kernel --------------------------------

def _make_dcn_kernel(tb, v_total, v_offsets, n_emb, num_cross, num_deep):
    """Fused gather + cross-network + deep-MLP + sigmoid kernel (batch on lanes)."""

    def kernel(*refs):
        # Refs: dense_T, cat_T, packed_T, cross_w, cross_b,
        #       (deep_w, deep_b)*, out_w, out_b, out_ref
        dense_ref, cat_ref, packed_ref = refs[0], refs[1], refs[2]
        cw_ref, cb_ref = refs[3], refs[4]           # (L,1,D), (L,1,1)
        idx = 5
        deep_refs = []
        for _ in range(num_deep):
            deep_refs.append((refs[idx], refs[idx + 1]))   # (out,in), (out,1)
            idx += 2
        wo_ref, bo_ref = refs[idx], refs[idx + 1]   # (1,h_last), (1,1)
        out_ref = refs[idx + 2]                     # (1, TB)

        # ---- Fused one-hot over all tables (batch on lanes) ----
        cat = cat_ref[...]                          # (n_emb, TB) int32
        row_iota = jax.lax.broadcasted_iota(jnp.int32, (v_total, tb), 0)
        onehot = (row_iota == (cat[0:1, :] + v_offsets[0])).astype(jnp.float32)
        for j in range(1, n_emb):
            onehot = onehot + (
                row_iota == (cat[j:j + 1, :] + v_offsets[j])).astype(jnp.float32)

        # ---- x^T = dense part (num / one-hot, zero gap) + embedding part ----
        # packed_T is (D, sumV) block-diagonal; result rows land directly at
        # their x-row offsets, so a single VPU add assembles x — no scratch.
        x = dense_ref[...] + jnp.dot(packed_ref[...], onehot,
                                     preferred_element_type=jnp.float32)  # (D,TB)

        # ---- Cross network: x = x + Linear(x); proj is one row, broadcast ----
        for l in range(num_cross):
            proj = jnp.dot(cw_ref[l], x,
                           preferred_element_type=jnp.float32) + cb_ref[l]  # (1,TB)
            x = x + proj

        # ---- Deep MLP on the MXU (torch (out, in) weights, batch on lanes) ----
        h = x
        for w_ref, b_ref in deep_refs:
            h = jnp.maximum(
                jnp.dot(w_ref[...], h, preferred_element_type=jnp.float32)
                + b_ref[...], 0.0)

        # ---- Output head + sigmoid: already (1, TB), lane-dense store ----
        logit = jnp.dot(wo_ref[...], h,
                        preferred_element_type=jnp.float32) + bo_ref[...]
        out_ref[...] = jax.nn.sigmoid(logit)

    return kernel


# ----------------------------- Model wrapper ---------------------------------

def init_params(key, num_numerical, embedding_sizes, num_one_hot,
                cross_layers, deep_layers):
    """Deterministic parameter init (PyTorch-equivalent shapes / layouts)."""
    d_in = num_numerical + sum(e for _, e in embedding_sizes) + num_one_hot
    keys = jax.random.split(key, 64)
    ki = iter(range(64))

    def nrm(shape):
        return 0.1 * jax.random.normal(keys[next(ki)], shape, dtype=jnp.float32)

    params = {}
    # Embedding tables: (num_categories + 1, emb_size)
    params["emb_tables"] = [nrm((nc + 1, es)) for nc, es in embedding_sizes]
    # Cross layers: torch Linear(d_in, num_numerical=1) weight is (1, d_in).
    params["cross_w"] = jnp.stack([nrm((1, d_in)) for _ in range(cross_layers)])
    params["cross_b"] = jnp.stack([nrm((1, 1)) for _ in range(cross_layers)])
    # Deep layers: torch layout (out, in); bias stored as a column (out, 1).
    deep_w, deep_b = [], []
    cur = d_in
    for units in deep_layers:
        deep_w.append(nrm((units, cur)))
        deep_b.append(nrm((units, 1)))
        cur = units
    params["deep_w"] = deep_w
    params["deep_b"] = deep_b
    # Output layer: Linear(cur, 1), torch weight layout (1, cur).
    params["out_w"] = nrm((1, cur))
    params["out_b"] = nrm((1, 1))
    return params


def dcnv2_forward(params, num_features, cat_features, one_hot_features):
    num_numerical = int(num_features.shape[1])
    # The torch module's `x = x + layer(x)` only broadcasts for num_numerical==1.
    assert num_numerical == 1, (
        "DCNv2 cross-layer broadcast requires num_numerical == 1")

    emb_rows = [int(t.shape[0]) for t in params["emb_tables"]]
    emb_dims = [int(t.shape[1]) for t in params["emb_tables"]]
    n_emb = len(emb_rows)
    assert n_emb >= 1
    sum_e = sum(emb_dims)
    v_total = sum(emb_rows)
    v_offsets = []
    off = 0
    for r in emb_rows:
        v_offsets.append(off)
        off += r

    num_one_hot = int(one_hot_features.shape[1])
    d_in = num_numerical + sum_e + num_one_hot
    num_cross = int(params["cross_w"].shape[0])
    num_deep = len(params["deep_w"])

    B = int(num_features.shape[0])

    # ---- Batch tile: 512..4096 rows, >= 2 tiles whenever B spans >= 2 quanta
    # (so both v7x TensorCores get work); single tile for tiny batches.
    LANE_Q = 512
    n_q = (B + LANE_Q - 1) // LANE_Q
    if n_q <= 1:
        TB = LANE_Q
    else:
        TB = min(4096, LANE_Q * ((n_q + 1) // 2))
    B_pad = _round_up(B, TB)
    n_tiles = B_pad // TB

    # ---- Wrapper-side input packing ----
    f32 = jnp.float32
    # Dense (num + zero gap for embeddings + one-hot), transposed: (D, B_pad).
    dense = jnp.concatenate(
        [num_features.astype(f32),
         jnp.zeros((B, sum_e), f32),
         one_hot_features.astype(f32)], axis=1)
    dense_T = jnp.pad(dense, ((0, B_pad - B), (0, 0))).T          # (D, B_pad)
    cat_T = jnp.pad(cat_features.astype(jnp.int32),
                    ((0, B_pad - B), (0, 0))).T                    # (n_emb, B_pad)

    # Block-diagonal packed embedding table, already placed at x-row offsets.
    packed_T = jnp.zeros((d_in, v_total), f32)
    e_off = num_numerical
    v_off = 0
    for tab in params["emb_tables"]:
        V, E = int(tab.shape[0]), int(tab.shape[1])
        packed_T = packed_T.at[e_off:e_off + E, v_off:v_off + V].set(tab.T)
        e_off += E
        v_off += V

    kernel = _make_dcn_kernel(TB, v_total, v_offsets, n_emb, num_cross, num_deep)

    inputs = [dense_T, cat_T, packed_T, params["cross_w"], params["cross_b"]]
    for w, b in zip(params["deep_w"], params["deep_b"]):
        inputs += [w, b]
    inputs += [params["out_w"], params["out_b"]]

    def stream_spec(rows):
        return pl.BlockSpec((rows, TB), lambda i: (0, i))

    def const_spec(arr):
        nd = arr.ndim
        return pl.BlockSpec(tuple(arr.shape), lambda i, _nd=nd: (0,) * _nd)

    in_specs = ([stream_spec(d_in), stream_spec(n_emb)]
                + [const_spec(a) for a in inputs[2:]])

    # Lane-dense output: (1, B_pad), one (1, TB) block per grid step.
    out_spec = pl.BlockSpec((1, TB), lambda i: (0, i))

    # Advisory cost estimate for XLA scheduling around the kernel.
    deep_dims = [d_in] + [int(w.shape[0]) for w in params["deep_w"]]
    flops_col = 2 * d_in * v_total
    flops_col += num_cross * 3 * d_in
    flops_col += 2 * sum(deep_dims[i] * deep_dims[i + 1]
                         for i in range(len(deep_dims) - 1))
    flops_col += 2 * deep_dims[-1]
    bytes_accessed = sum(int(a.size) * int(a.dtype.itemsize) for a in inputs)
    bytes_accessed += B_pad * 4
    cost = pl.CostEstimate(flops=flops_col * B_pad,
                           transcendentals=B_pad,
                           bytes_accessed=bytes_accessed)

    out = pl.pallas_call(
        kernel,
        out_shape=jax.ShapeDtypeStruct((1, B_pad), jnp.float32),
        grid=(n_tiles,),
        in_specs=in_specs,
        out_specs=out_spec,
        compiler_params=pltpu.CompilerParams(
            dimension_semantics=("parallel",),
            vmem_limit_bytes=_vmem_limit_bytes()),
        cost_estimate=cost,
    )(*inputs)

    # torch .squeeze() -> (B,)
    return out[0, :B]


def dcnv2_reference(params, num_features, cat_features, one_hot_features):
    """Pure-JAX reference for correctness checking."""
    embedded = [jnp.take(tab, cat_features[:, i], axis=0)
                for i, tab in enumerate(params["emb_tables"])]
    x = jnp.concatenate([num_features] + embedded + [one_hot_features], axis=1)
    for l in range(params["cross_w"].shape[0]):
        proj = x @ params["cross_w"][l].T + params["cross_b"][l]
        x = x + proj
    h = x
    for w, b in zip(params["deep_w"], params["deep_b"]):
        h = jnp.maximum(h @ w.T + b.T, 0.0)
    logit = h @ params["out_w"].T + params["out_b"]
    return jax.nn.sigmoid(logit).squeeze(-1)


# --------------------------------- main --------------------------------------

if __name__ == "__main__":
    # Small, module-consistent config (num_numerical must be 1; see note above).
    B = 8
    num_numerical = 1
    embedding_sizes = [(10, 4), (10, 4)]     # (num_categories, emb_size)
    num_one_hot = 3
    cross_layers = 2
    deep_layers = [32, 16]

    key = jax.random.PRNGKey(0)
    k_par, k_num, k_cat, k_oh = jax.random.split(key, 4)

    params = init_params(k_par, num_numerical, embedding_sizes, num_one_hot,
                         cross_layers, deep_layers)

    num_features = jax.random.normal(k_num, (B, num_numerical), dtype=jnp.float32)
    cat_features = jax.random.randint(
        k_cat, (B, len(embedding_sizes)), 0, embedding_sizes[0][0] + 1,
        dtype=jnp.int32)
    one_hot_features = jax.nn.one_hot(
        jax.random.randint(k_oh, (B,), 0, num_one_hot), num_one_hot,
        dtype=jnp.float32)

    out = dcnv2_forward(params, num_features, cat_features, one_hot_features)
    out = jax.block_until_ready(out)

    ref = dcnv2_reference(params, num_features, cat_features, one_hot_features)
    assert out.shape == (B,), out.shape
    assert jnp.allclose(out, ref, atol=1e-4, rtol=1e-4), (out, ref)

    print("KERNEL_OK")
</pallas_src>

<mosaic_0001>
module attributes {stable_mosaic.version = 11 : i64} {
  func.func @kernel(%arg0: i32, %arg1: memref<12x512xf32, #tpu.memory_space<vmem>>, %arg2: memref<2x512xi32, #tpu.memory_space<vmem>>, %arg3: memref<12x22xf32, #tpu.memory_space<vmem>>, %arg4: memref<2x1x12xf32, #tpu.memory_space<vmem>>, %arg5: memref<2x1x1xf32, #tpu.memory_space<vmem>>, %arg6: memref<32x12xf32, #tpu.memory_space<vmem>>, %arg7: memref<32x1xf32, #tpu.memory_space<vmem>>, %arg8: memref<16x32xf32, #tpu.memory_space<vmem>>, %arg9: memref<16x1xf32, #tpu.memory_space<vmem>>, %arg10: memref<1x16xf32, #tpu.memory_space<vmem>>, %arg11: memref<1x1xf32, #tpu.memory_space<vmem>>, %arg12: memref<1x512xf32, #tpu.memory_space<vmem>>) attributes {dimension_semantics = [#tpu.dimension_semantics<parallel>], iteration_bounds = array<i64: 1>, scalar_prefetch = 0 : i64, scratch_operands = 0 : i64, tpu.core_type = #tpu.core_type<tc>, window_params = [{transform_indices = @transform_0, window_bounds = array<i64: 12, 512>}, {transform_indices = @transform_1, window_bounds = array<i64: 2, 512>}, {pipeline_mode = #tpu.pipeline_mode<synchronous>, transform_indices = @transform_2, window_bounds = array<i64: 12, 22>}, {pipeline_mode = #tpu.pipeline_mode<synchronous>, transform_indices = @transform_3, window_bounds = array<i64: 2, 1, 12>}, {pipeline_mode = #tpu.pipeline_mode<synchronous>, transform_indices = @transform_4, window_bounds = array<i64: 2, 1, 1>}, {pipeline_mode = #tpu.pipeline_mode<synchronous>, transform_indices = @transform_5, window_bounds = array<i64: 32, 12>}, {pipeline_mode = #tpu.pipeline_mode<synchronous>, transform_indices = @transform_6, window_bounds = array<i64: 32, 1>}, {pipeline_mode = #tpu.pipeline_mode<synchronous>, transform_indices = @transform_7, window_bounds = array<i64: 16, 32>}, {pipeline_mode = #tpu.pipeline_mode<synchronous>, transform_indices = @transform_8, window_bounds = array<i64: 16, 1>}, {pipeline_mode = #tpu.pipeline_mode<synchronous>, transform_indices = @transform_9, window_bounds = array<i64: 1, 16>}, {pipeline_mode = #tpu.pipeline_mode<synchronous>, transform_indices = @transform_10, window_bounds = array<i64: 1, 1>}, {transform_indices = @transform_11, window_bounds = array<i64: 1, 512>}]} {
    %c0 = arith.constant 0 : index
    %c0_0 = arith.constant 0 : index
    %0 = vector.load %arg2[%c0, %c0_0] : memref<2x512xi32, #tpu.memory_space<vmem>>, vector<2x512xi32>
    %1 = tpu.iota {dimensions = array<i32: 0>} : vector<22x512xi32>
    %2 = vector.extract_strided_slice %0 {offsets = [0, 0], sizes = [1, 512], strides = [1, 1]} : vector<2x512xi32> to vector<1x512xi32>
    %c0_i32 = arith.constant 0 : i32
    %3 = vector.broadcast %c0_i32 : i32 to vector<1x512xi32>
    %4 = arith.addi %2, %3 : vector<1x512xi32>
    %5 = vector.broadcast %4 : vector<1x512xi32> to vector<22x512xi32>
    %6 = arith.cmpi eq, %1, %5 : vector<22x512xi32>
    %7 = arith.extui %6 : vector<22x512xi1> to vector<22x512xi32>
    %8 = arith.sitofp %7 : vector<22x512xi32> to vector<22x512xf32>
    %9 = vector.extract_strided_slice %0 {offsets = [1, 0], sizes = [1, 512], strides = [1, 1]} : vector<2x512xi32> to vector<1x512xi32>
    %c11_i32 = arith.constant 11 : i32
    %10 = vector.broadcast %c11_i32 : i32 to vector<1x512xi32>
    %11 = arith.addi %9, %10 : vector<1x512xi32>
    %12 = vector.broadcast %11 : vector<1x512xi32> to vector<22x512xi32>
    %13 = arith.cmpi eq, %1, %12 : vector<22x512xi32>
    %14 = arith.extui %13 : vector<22x512xi1> to vector<22x512xi32>
    %15 = arith.sitofp %14 : vector<22x512xi32> to vector<22x512xf32>
    %16 = arith.addf %8, %15 : vector<22x512xf32>
    %c0_1 = arith.constant 0 : index
    %c0_2 = arith.constant 0 : index
    %17 = vector.load %arg1[%c0_1, %c0_2] : memref<12x512xf32, #tpu.memory_space<vmem>>, vector<12x512xf32>
    %c0_3 = arith.constant 0 : index
    %c0_4 = arith.constant 0 : index
    %18 = vector.load %arg3[%c0_3, %c0_4] : memref<12x22xf32, #tpu.memory_space<vmem>>, vector<12x22xf32>
    %cst = arith.constant dense<0.000000e+00> : vector<12x512xf32>
    %19 = tpu.matmul %18, %16, %cst {dimension_numbers = #tpu.dot_dimension_numbers<[1], [0], [0], [1], [0, 0, 1, 1], [], []>} : vector<12x22xf32>, vector<22x512xf32>, vector<12x512xf32> -> vector<12x512xf32>
    %20 = arith.addf %17, %19 : vector<12x512xf32>
    %c0_5 = arith.constant 0 : index
    %c0_6 = arith.constant 0 : index
    %c0_7 = arith.constant 0 : index
    %21 = vector.load %arg4[%c0_5, %c0_6, %c0_7] : memref<2x1x12xf32, #tpu.memory_space<vmem>>, vector<1x1x12xf32>
    %22 = vector.shape_cast %21 : vector<1x1x12xf32> to vector<1x12xf32>
    %cst_8 = arith.constant dense<0.000000e+00> : vector<1x512xf32>
    %23 = tpu.matmul %22, %20, %cst_8 {dimension_numbers = #tpu.dot_dimension_numbers<[1], [0], [0], [1], [0, 0, 1, 1], [], []>} : vector<1x12xf32>, vector<12x512xf32>, vector<1x512xf32> -> vector<1x512xf32>
    %c0_9 = arith.constant 0 : index
    %c0_10 = arith.constant 0 : index
    %c0_11 = arith.constant 0 : index
    %24 = vector.load %arg5[%c0_9, %c0_10, %c0_11] : memref<2x1x1xf32, #tpu.memory_space<vmem>>, vector<1x1x1xf32>
    %25 = vector.shape_cast %24 : vector<1x1x1xf32> to vector<1x1xf32>
    %26 = vector.broadcast %25 : vector<1x1xf32> to vector<1x512xf32>
    %27 = arith.addf %23, %26 : vector<1x512xf32>
    %28 = vector.broadcast %27 : vector<1x512xf32> to vector<12x512xf32>
    %29 = arith.addf %20, %28 : vector<12x512xf32>
    %c1 = arith.constant 1 : index
    %c0_12 = arith.constant 0 : index
    %c0_13 = arith.constant 0 : index
    %30 = vector.load %arg4[%c1, %c0_12, %c0_13] : memref<2x1x12xf32, #tpu.memory_space<vmem>>, vector<1x1x12xf32>
    %31 = vector.shape_cast %30 : vector<1x1x12xf32> to vector<1x12xf32>
    %cst_14 = arith.constant dense<0.000000e+00> : vector<1x512xf32>
    %32 = tpu.matmul %31, %29, %cst_14 {dimension_numbers = #tpu.dot_dimension_numbers<[1], [0], [0], [1], [0, 0, 1, 1], [], []>} : vector<1x12xf32>, vector<12x512xf32>, vector<1x512xf32> -> vector<1x512xf32>
    %c1_15 = arith.constant 1 : index
    %c0_16 = arith.constant 0 : index
    %c0_17 = arith.constant 0 : index
    %33 = vector.load %arg5[%c1_15, %c0_16, %c0_17] : memref<2x1x1xf32, #tpu.memory_space<vmem>>, vector<1x1x1xf32>
    %34 = vector.shape_cast %33 : vector<1x1x1xf32> to vector<1x1xf32>
    %35 = vector.broadcast %34 : vector<1x1xf32> to vector<1x512xf32>
    %36 = arith.addf %32, %35 : vector<1x512xf32>
    %37 = vector.broadcast %36 : vector<1x512xf32> to vector<12x512xf32>
    %38 = arith.addf %29, %37 : vector<12x512xf32>
    %c0_18 = arith.constant 0 : index
    %c0_19 = arith.constant 0 : index
    %39 = vector.load %arg6[%c0_18, %c0_19] : memref<32x12xf32, #tpu.memory_space<vmem>>, vector<32x12xf32>
    %cst_20 = arith.constant dense<0.000000e+00> : vector<32x512xf32>
    %40 = tpu.matmul %39, %38, %cst_20 {dimension_numbers = #tpu.dot_dimension_numbers<[1], [0], [0], [1], [0, 0, 1, 1], [], []>} : vector<32x12xf32>, vector<12x512xf32>, vector<32x512xf32> -> vector<32x512xf32>
    %c0_21 = arith.constant 0 : index
    %c0_22 = arith.constant 0 : index
    %41 = vector.load %arg7[%c0_21, %c0_22] : memref<32x1xf32, #tpu.memory_space<vmem>>, vector<32x1xf32>
    %42 = vector.broadcast %41 : vector<32x1xf32> to vector<32x512xf32>
    %43 = arith.addf %40, %42 : vector<32x512xf32>
    %cst_23 = arith.constant 0.000000e+00 : f32
    %44 = vector.broadcast %cst_23 : f32 to vector<32x512xf32>
    %45 = arith.maximumf %43, %44 : vector<32x512xf32>
    %c0_24 = arith.constant 0 : index
    %c0_25 = arith.constant 0 : index
    %46 = vector.load %arg8[%c0_24, %c0_25] : memref<16x32xf32, #tpu.memory_space<vmem>>, vector<16x32xf32>
    %cst_26 = arith.constant dense<0.000000e+00> : vector<16x512xf32>
    %47 = tpu.matmul %46, %45, %cst_26 {dimension_numbers = #tpu.dot_dimension_numbers<[1], [0], [0], [1], [0, 0, 1, 1], [], []>} : vector<16x32xf32>, vector<32x512xf32>, vector<16x512xf32> -> vector<16x512xf32>
    %c0_27 = arith.constant 0 : index
    %c0_28 = arith.constant 0 : index
    %48 = vector.load %arg9[%c0_27, %c0_28] : memref<16x1xf32, #tpu.memory_space<vmem>>, vector<16x1xf32>
    %49 = vector.broadcast %48 : vector<16x1xf32> to vector<16x512xf32>
    %50 = arith.addf %47, %49 : vector<16x512xf32>
    %cst_29 = arith.constant 0.000000e+00 : f32
    %51 = vector.broadcast %cst_29 : f32 to vector<16x512xf32>
    %52 = arith.maximumf %50, %51 : vector<16x512xf32>
    %c0_30 = arith.constant 0 : index
    %c0_31 = arith.constant 0 : index
    %53 = vector.load %arg10[%c0_30, %c0_31] : memref<1x16xf32, #tpu.memory_space<vmem>>, vector<1x16xf32>
    %cst_32 = arith.constant dense<0.000000e+00> : vector<1x512xf32>
    %54 = tpu.matmul %53, %52, %cst_32 {dimension_numbers = #tpu.dot_dimension_numbers<[1], [0], [0], [1], [0, 0, 1, 1], [], []>} : vector<1x16xf32>, vector<16x512xf32>, vector<1x512xf32> -> vector<1x512xf32>
    %c0_33 = arith.constant 0 : index
    %c0_34 = arith.constant 0 : index
    %55 = vector.load %arg11[%c0_33, %c0_34] : memref<1x1xf32, #tpu.memory_space<vmem>>, vector<1x1xf32>
    %56 = vector.broadcast %55 : vector<1x1xf32> to vector<1x512xf32>
    %57 = arith.addf %54, %56 : vector<1x512xf32>
    %58 = arith.negf %57 : vector<1x512xf32>
    %59 = math.exp %58 : vector<1x512xf32>
    %cst_35 = arith.constant 1.000000e+00 : f32
    %60 = vector.broadcast %cst_35 : f32 to vector<1x512xf32>
    %61 = arith.addf %60, %59 : vector<1x512xf32>
    %62 = arith.divf %60, %61 : vector<1x512xf32>
    %c0_36 = arith.constant 0 : index
    %c0_37 = arith.constant 0 : index
    %63 = vector.load %arg12[%c0_36, %c0_37] : memref<1x512xf32, #tpu.memory_space<vmem>>, vector<1x512xf32>
    tpu.vector_store %arg12[%c0_36, %c0_37], %62 {strides = array<i32>} : memref<1x512xf32, #tpu.memory_space<vmem>>, vector<1x512xf32>,
    return
  }
  func.func @transform_0(%arg0: i32) -> (i32, i32) {
    %c0_i32 = arith.constant 0 : i32
    %c0_i32_0 = arith.constant 0 : i32
    return %c0_i32, %arg0 : i32, i32
  }
  func.func @transform_1(%arg0: i32) -> (i32, i32) {
    %c0_i32 = arith.constant 0 : i32
    %c0_i32_0 = arith.constant 0 : i32
    return %c0_i32, %arg0 : i32, i32
  }
  func.func @transform_2(%arg0: i32) -> (i32, i32) {
    %c0_i32 = arith.constant 0 : i32
    %c0_i32_0 = arith.constant 0 : i32
    %c0_i32_1 = arith.constant 0 : i32
    return %c0_i32, %c0_i32_0 : i32, i32
  }
  func.func @transform_3(%arg0: i32) -> (i32, i32, i32) {
    %c0_i32 = arith.constant 0 : i32
    %c0_i32_0 = arith.constant 0 : i32
    %c0_i32_1 = arith.constant 0 : i32
    %c0_i32_2 = arith.constant 0 : i32
    return %c0_i32, %c0_i32_0, %c0_i32_1 : i32, i32, i32
  }
  func.func @transform_4(%arg0: i32) -> (i32, i32, i32) {
    %c0_i32 = arith.constant 0 : i32
    %c0_i32_0 = arith.constant 0 : i32
    %c0_i32_1 = arith.constant 0 : i32
    %c0_i32_2 = arith.constant 0 : i32
    return %c0_i32, %c0_i32_0, %c0_i32_1 : i32, i32, i32
  }
  func.func @transform_5(%arg0: i32) -> (i32, i32) {
    %c0_i32 = arith.constant 0 : i32
    %c0_i32_0 = arith.constant 0 : i32
    %c0_i32_1 = arith.constant 0 : i32
    return %c0_i32, %c0_i32_0 : i32, i32
  }
  func.func @transform_6(%arg0: i32) -> (i32, i32) {
    %c0_i32 = arith.constant 0 : i32
    %c0_i32_0 = arith.constant 0 : i32
    %c0_i32_1 = arith.constant 0 : i32
    return %c0_i32, %c0_i32_0 : i32, i32
  }
  func.func @transform_7(%arg0: i32) -> (i32, i32) {
    %c0_i32 = arith.constant 0 : i32
    %c0_i32_0 = arith.constant 0 : i32
    %c0_i32_1 = arith.constant 0 : i32
    return %c0_i32, %c0_i32_0 : i32, i32
  }
  func.func @transform_8(%arg0: i32) -> (i32, i32) {
    %c0_i32 = arith.constant 0 : i32
    %c0_i32_0 = arith.constant 0 : i32
    %c0_i32_1 = arith.constant 0 : i32
    return %c0_i32, %c0_i32_0 : i32, i32
  }
  func.func @transform_9(%arg0: i32) -> (i32, i32) {
    %c0_i32 = arith.constant 0 : i32
    %c0_i32_0 = arith.constant 0 : i32
    %c0_i32_1 = arith.constant 0 : i32
    return %c0_i32, %c0_i32_0 : i32, i32
  }
  func.func @transform_10(%arg0: i32) -> (i32, i32) {
    %c0_i32 = arith.constant 0 : i32
    %c0_i32_0 = arith.constant 0 : i32
    %c0_i32_1 = arith.constant 0 : i32
    return %c0_i32, %c0_i32_0 : i32, i32
  }
  func.func @transform_11(%arg0: i32) -> (i32, i32) {
    %c0_i32 = arith.constant 0 : i32
    %c0_i32_0 = arith.constant 0 : i32
    return %c0_i32, %arg0 : i32, i32
  }
}

</mosaic_0001>

<llo_original>
// kernel: tpu_custom_call.1
$region0: #{tpu_custom_call.1}
  #allocation0 [shape = 'u32[]', space=smem, size = 0x4, offset = 0x4, fixed_abs, tag = 'smem constant byte address 0x4 - core index']
  #allocation1 [shape = 'u32[144,128]{1,0:T(1,128)}', space=vmem, size = 0x12000, scoped, tag = 'internal scratch']
  #allocation2 [shape = 'f32[1,1]{1,0:T(1,128)S(1)}', space=vmem, size = 0x200, scoped, tag = 'scoped memory for tpu_custom_call.1']
  %s0 = inlined_call_operand.vmem [shape: f32[12,512], index: 0, kind: input, shape index: {}]
  %s1 = inlined_call_operand.hbm [shape: s32[2,512], index: 1, kind: input, shape index: {}]
  %s2 = inlined_call_operand.vmem [shape: f32[12,22], index: 2, kind: input, shape index: {}]
  %s3 = inlined_call_operand.vmem [shape: f32[2,1,12], index: 3, kind: input, shape index: {}]
  %s4 = inlined_call_operand.vmem [shape: f32[2,1,1], index: 4, kind: input, shape index: {}]
  %s5 = inlined_call_operand.vmem [shape: f32[32,12], index: 5, kind: input, shape index: {}]
  %s6 = inlined_call_operand.vmem [shape: f32[32,1], index: 6, kind: input, shape index: {}]
  %s7 = inlined_call_operand.vmem [shape: f32[16,32], index: 7, kind: input, shape index: {}]
  %s8 = inlined_call_operand.vmem [shape: f32[16,1], index: 8, kind: input, shape index: {}]
  %s9 = inlined_call_operand.vmem [shape: f32[1,16], index: 9, kind: input, shape index: {}]
  %s10 = inlined_call_operand.<no memory space> [shape: f32[1,1], index: 10, kind: input, shape index: {}]
  %s11 = inlined_call_operand.hbm [shape: f32[1,512], index: 11, kind: output, shape index: {}]
  %s12 = sld [smem:[#allocation0]]
  $region58: #{tpu_custom_call.1} parent=0
    _
  %s14 = ssub.s32 1, %s12
  %s15 = scalar_select 0, %s14, %s12
  %v16 = vstv %s10
  %17 = vst [vmem:[#allocation2] sm:$0x1] %v16
  $region1: #{tpu_custom_call.1} parent=0
    #allocation3 [shape = 'u8[4096]{0}', space=vmem, size = 0x1000, scoped, tag = 'input window, operand 1, single buffered']
    #allocation4 [shape = 's32[1]{0}', space=sflag, size = 0x4, scoped, tag = 'scoped memory for tpu_custom_call.1']
    #allocation5 [shape = 's32[1]{0}', space=sflag, size = 0x4, scoped, tag = 'scoped memory for tpu_custom_call.1']
    #allocation6 [shape = 'u8[2048]{0}', space=vmem, size = 0x800, scoped, tag = 'output window, operand 0, single buffered']
    %18 = vsyncpa [#allocation4], 0
    %19 = vsyncpa [#allocation5], 0
    // Predicated region
    $region2: #{tpu_custom_call.1} parent=1 // pred_check
      _
    $region3: #{tpu_custom_call.1} parent=1 // pred_check_branch
      %21 = sbr.rel (0) target = $region5
    $region4: #{tpu_custom_call.1} parent=1 // pred_region
      _
    $region5: #{tpu_custom_call.1} parent=1 // pred_fallthru
      _
    // Predicated region
    $region6: #{tpu_custom_call.1} parent=1 // pred_check
      _
    $region7: #{tpu_custom_call.1} parent=1 // pred_check_branch
      %23 = sbr.rel (0) target = $region9
    $region8: #{tpu_custom_call.1} parent=1 // pred_region
      %s25 = ssub.s32 128, 128
      %26 = vsyncadd [#allocation4], %s25
      %s28 = sshll.u32 [#allocation3], 4
      %s29 = int_to_ptr.vmem [resolvable:$true] %s28
      %31 = dma.hbm_to_vmem [thread:$0]  %s1, 128, %s29, [#allocation4]
    $region9: #{tpu_custom_call.1} parent=1 // pred_fallthru
      _
    // Predicated region
    $region10: #{tpu_custom_call.1} parent=1 // pred_check
      _
    $region11: #{tpu_custom_call.1} parent=1 // pred_check_branch
      %33 = sbr.rel (0) target = $region13
    $region12: #{tpu_custom_call.1} parent=1 // pred_region
      _
    $region13: #{tpu_custom_call.1} parent=1 // pred_fallthru
      _
    // Predicated region
    $region14: #{tpu_custom_call.1} parent=1 // pred_check
      _
    $region15: #{tpu_custom_call.1} parent=1 // pred_check_branch
      %35 = sbr.rel (0) target = $region17
    $region16: #{tpu_custom_call.1} parent=1 // pred_region
      _
    $region17: #{tpu_custom_call.1} parent=1 // pred_fallthru
      _
    // Predicated region
    $region18: #{tpu_custom_call.1} parent=1 // pred_check
      _
    $region19: #{tpu_custom_call.1} parent=1 // pred_check_branch
      %37 = sbr.rel (0) target = $region21
    $region20: #{tpu_custom_call.1} parent=1 // pred_region
      _
    $region21: #{tpu_custom_call.1} parent=1 // pred_fallthru
      _
    // Predicated region
    $region22: #{tpu_custom_call.1} parent=1 // pred_check
      _
    $region23: #{tpu_custom_call.1} parent=1 // pred_check_branch
      %39 = sbr.rel (0) target = $region25
    $region24: #{tpu_custom_call.1} parent=1 // pred_region
      _
    $region25: #{tpu_custom_call.1} parent=1 // pred_fallthru
      _
    // Predicated region
    $region26: #{tpu_custom_call.1} parent=1 // pred_check
      _
    $region27: #{tpu_custom_call.1} parent=1 // pred_check_branch
      %41 = sbr.rel (0) target = $region29
    $region28: #{tpu_custom_call.1} parent=1 // pred_region
      _
    $region29: #{tpu_custom_call.1} parent=1 // pred_fallthru
      _
    // Predicated region
    $region30: #{tpu_custom_call.1} parent=1 // pred_check
      _
    $region31: #{tpu_custom_call.1} parent=1 // pred_check_branch
      %43 = sbr.rel (0) target = $region33
    $region32: #{tpu_custom_call.1} parent=1 // pred_region
      _
    $region33: #{tpu_custom_call.1} parent=1 // pred_fallthru
      _
    // Predicated region
    $region34: #{tpu_custom_call.1} parent=1 // pred_check
      _
    $region35: #{tpu_custom_call.1} parent=1 // pred_check_branch
      %45 = sbr.rel (0) target = $region37
    $region36: #{tpu_custom_call.1} parent=1 // pred_region
      _
    $region37: #{tpu_custom_call.1} parent=1 // pred_fallthru
      _
    // Predicated region
    $region38: #{tpu_custom_call.1} parent=1 // pred_check
      _
    $region39: #{tpu_custom_call.1} parent=1 // pred_check_branch
      %47 = sbr.rel (0) target = $region41
    $region40: #{tpu_custom_call.1} parent=1 // pred_region
      _
    $region41: #{tpu_custom_call.1} parent=1 // pred_fallthru
      _
    // Predicated region
    $region42: #{tpu_custom_call.1} parent=1 // pred_check
      _
    $region43: #{tpu_custom_call.1} parent=1 // pred_check_branch
      %49 = sbr.rel (0) target = $region45
    $region44: #{tpu_custom_call.1} parent=1 // pred_region
      _
    $region45: #{tpu_custom_call.1} parent=1 // pred_fallthru
      _
    // Predicated region
    $region46: #{tpu_custom_call.1} parent=1 // pred_check
      _
    $region47: #{tpu_custom_call.1} parent=1 // pred_check_branch
      %51 = sbr.rel (0) target = $region49
    $region48: #{tpu_custom_call.1} parent=1 // pred_region
      %52 = dma.done [#allocation4], 128
    $region49: #{tpu_custom_call.1} parent=1 // pred_fallthru
      _
    %v53 = vld [vmem:[#allocation3] sm:$0xff]
    %v54 = vlaneseq
    %v55 = vshrl.u32 %v54, 7
    %v56 = vadd.s32 %v55, 8
    %v57 = vadd.s32 %v55, 16
    %v58 = vlaneseq
    %v59 = vshrl.u32 %v58, 7
    %v60 = vsub.s32 0, %v59
    %v61 = vrot.slane %v53, %v60
    %v62 = vlaneseq
    %v63 = vshrl.u32 %v62, 7
    %v64 = vsub.s32 2, %v63
    %v65 = vrot.slane %v53, %v64
    %v66 = vlaneseq
    %v67 = vshrl.u32 %v66, 7
    %v68 = vsub.s32 4, %v67
    %v69 = vrot.slane %v53, %v68
    %v70 = vlaneseq
    %v71 = vshrl.u32 %v70, 7
    %v72 = vsub.s32 6, %v71
    %v73 = vrot.slane %v53, %v72
    %v74 = vlaneseq
    %v75 = vshrl.u32 %v74, 7
    %v76 = vsub.s32 0, %v75
    %v77 = vrot.slane %v61, %v76
    %v78 = vlaneseq
    %v79 = vshrl.u32 %v78, 7
    %v80 = vsub.s32 0, %v79
    %v81 = vrot.slane %v65, %v80
    %v82 = vlaneseq
    %v83 = vshrl.u32 %v82, 7
    %v84 = vsub.s32 0, %v83
    %v85 = vrot.slane %v69, %v84
    %v86 = vlaneseq
    %v87 = vshrl.u32 %v86, 7
    %v88 = vsub.s32 0, %v87
    %v89 = vrot.slane %v73, %v88
    %vm90 = vcmp.eq.s32.totalorder %v55, %v77
    %vm91 = vcmp.eq.s32.totalorder %v55, %v81
    %vm92 = vcmp.eq.s32.totalorder %v55, %v85
    %vm93 = vcmp.eq.s32.totalorder %v55, %v89
    %vm94 = vcmp.eq.s32.totalorder %v56, %v77
    %vm95 = vcmp.eq.s32.totalorder %v56, %v81
    %vm96 = vcmp.eq.s32.totalorder %v56, %v85
    %vm97 = vcmp.eq.s32.totalorder %v56, %v89
    %vm98 = vcmp.eq.s32.totalorder %v57, %v77
    %vm99 = vcmp.eq.s32.totalorder %v57, %v81
    %vm100 = vcmp.eq.s32.totalorder %v57, %v85
    %vm101 = vcmp.eq.s32.totalorder %v57, %v89
    %v102 = vsel %vm90, 1, 0
    %v103 = vsel %vm91, 1, 0
    %v104 = vsel %vm92, 1, 0
    %v105 = vsel %vm93, 1, 0
    %v106 = vsel %vm94, 1, 0
    %v107 = vsel %vm95, 1, 0
    %v108 = vsel %vm96, 1, 0
    %v109 = vsel %vm97, 1, 0
    %v110 = vsel %vm98, 1, 0
    %v111 = vsel %vm99, 1, 0
    %v112 = vsel %vm100, 1, 0
    %v113 = vsel %vm101, 1, 0
    %v114 = vcvt.s32.f32 %v102
    %v115 = vcvt.s32.f32 %v103
    %v116 = vcvt.s32.f32 %v104
    %v117 = vcvt.s32.f32 %v105
    %v118 = vcvt.s32.f32 %v106
    %v119 = vcvt.s32.f32 %v107
    %v120 = vcvt.s32.f32 %v108
    %v121 = vcvt.s32.f32 %v109
    %v122 = vcvt.s32.f32 %v110
    %v123 = vcvt.s32.f32 %v111
    %v124 = vcvt.s32.f32 %v112
    %v125 = vcvt.s32.f32 %v113
    %v126 = vadd.s32 %v53, 11
    %v127 = vlaneseq
    %v128 = vshrl.u32 %v127, 7
    %v129 = vsub.s32 1, %v128
    %v130 = vrot.slane %v126, %v129
    %v131 = vlaneseq
    %v132 = vshrl.u32 %v131, 7
    %v133 = vsub.s32 3, %v132
    %v134 = vrot.slane %v126, %v133
    %v135 = vlaneseq
    %v136 = vshrl.u32 %v135, 7
    %v137 = vsub.s32 5, %v136
    %v138 = vrot.slane %v126, %v137
    %v139 = vlaneseq
    %v140 = vshrl.u32 %v139, 7
    %v141 = vsub.s32 7, %v140
    %v142 = vrot.slane %v126, %v141
    %v143 = vlaneseq
    %v144 = vshrl.u32 %v143, 7
    %v145 = vsub.s32 1, %v144
    %v146 = vrot.slane %v130, %v145
    %v147 = vlaneseq
    %v148 = vshrl.u32 %v147, 7
    %v149 = vsub.s32 1, %v148
    %v150 = vrot.slane %v134, %v149
    %v151 = vlaneseq
    %v152 = vshrl.u32 %v151, 7
    %v153 = vsub.s32 1, %v152
    %v154 = vrot.slane %v138, %v153
    %v155 = vlaneseq
    %v156 = vshrl.u32 %v155, 7
    %v157 = vsub.s32 1, %v156
    %v158 = vrot.slane %v142, %v157
    %vm159 = vcmp.eq.s32.totalorder %v55, %v146
    %vm160 = vcmp.eq.s32.totalorder %v55, %v150
    %vm161 = vcmp.eq.s32.totalorder %v55, %v154
    %vm162 = vcmp.eq.s32.totalorder %v55, %v158
    %vm163 = vcmp.eq.s32.totalorder %v56, %v146
    %vm164 = vcmp.eq.s32.totalorder %v56, %v150
    %vm165 = vcmp.eq.s32.totalorder %v56, %v154
    %vm166 = vcmp.eq.s32.totalorder %v56, %v158
    %vm167 = vcmp.eq.s32.totalorder %v57, %v146
    %vm168 = vcmp.eq.s32.totalorder %v57, %v150
    %vm169 = vcmp.eq.s32.totalorder %v57, %v154
    %vm170 = vcmp.eq.s32.totalorder %v57, %v158
    %v171 = vsel %vm159, 1, 0
    %v172 = vsel %vm160, 1, 0
    %v173 = vsel %vm161, 1, 0
    %v174 = vsel %vm162, 1, 0
    %v175 = vsel %vm163, 1, 0
    %v176 = vsel %vm164, 1, 0
    %v177 = vsel %vm165, 1, 0
    %v178 = vsel %vm166, 1, 0
    %v179 = vsel %vm167, 1, 0
    %v180 = vsel %vm168, 1, 0
    %v181 = vsel %vm169, 1, 0
    %v182 = vsel %vm170, 1, 0
    %v183 = vcvt.s32.f32 %v171
    %v184 = vcvt.s32.f32 %v172
    %v185 = vcvt.s32.f32 %v173
    %v186 = vcvt.s32.f32 %v174
    %v187 = vcvt.s32.f32 %v175
    %v188 = vcvt.s32.f32 %v176
    %v189 = vcvt.s32.f32 %v177
    %v190 = vcvt.s32.f32 %v178
    %v191 = vcvt.s32.f32 %v179
    %v192 = vcvt.s32.f32 %v180
    %v193 = vcvt.s32.f32 %v181
    %v194 = vcvt.s32.f32 %v182
    %v195 = vadd.f32 %v114, %v183
    %v196 = vadd.f32 %v115, %v184
    %v197 = vadd.f32 %v116, %v185
    %v198 = vadd.f32 %v117, %v186
    %v199 = vadd.f32 %v118, %v187
    %v200 = vadd.f32 %v119, %v188
    %v201 = vadd.f32 %v120, %v189
    %v202 = vadd.f32 %v121, %v190
    %v203 = vadd.f32 %v122, %v191
    %v204 = vadd.f32 %v123, %v192
    %v205 = vadd.f32 %v124, %v193
    %v206 = vadd.f32 %v125, %v194
    %v207 = vld [vmem:[%s0] sm:$0xff]
    %v208 = vld [vmem:[%s0 + $0x8] sm:$0xff]
    %v209 = vld [vmem:[%s0 + $0x10] sm:$0xff]
    %v210 = vld [vmem:[%s0 + $0x18] sm:$0xff]
    %v211 = vld [vmem:[%s0 + $0x20] sm:$0xf]
    %v212 = vld [vmem:[%s0 + $0x28] sm:$0xf]
    %v213 = vld [vmem:[%s0 + $0x30] sm:$0xf]
    %v214 = vld [vmem:[%s0 + $0x38] sm:$0xf]
    %v215 = vld [vmem:[%s2] sm:$0xff]
    %v216 = vld [vmem:[%s2 + $0x8] sm:$0xf]
    %vm217 = vcmask 179200
    %v219 = vsel %vm217, %v215, 0
    %v222 = vsel %vm217, %v216, 0
    %vm224 = vcmask 1045504
    %v226 = vsel %vm224, %v203, 0
    %v229 = vsel %vm224, %v204, 0
    %v232 = vsel %vm224, %v205, 0
    %v235 = vsel %vm224, %v206, 0
    %237 = vmatprep.subr.mxu0 %v196
    %238 = vmatpush1.msra.mxu0 %v195
    %239 = vmatprep.subr.mxu0 %v200
    %240 = vmatpush1.msra.mxu0 %v199
    %241 = vmatprep.subr.mxu0 %v229
    %242 = vmatpush1.msra.mxu0 %v226
    %243 = vmatprep.subr.mxu0 0.0
    %244 = vmatpush1.msra.mxu0 0.0
    %245 = vmatprep.subr.mxu0 0.0
    %246 = vmatpush1.msra.mxu0 0.0
    %247 = vmatprep.subr.mxu0 0.0
    %248 = vmatpush1.msra.mxu0 0.0
    %249 = vmatprep.subr.mxu0 0.0
    %250 = vmatpush1.msra.mxu0 0.0
    %251 = vmatprep.subr.mxu0 0.0
    %252 = vmatpush1.msra.mxu0 0.0
    %253 = vmatprep.subr.mxu0 0.0
    %254 = vmatpush1.msra.mxu0 0.0
    %255 = vmatprep.subr.mxu0 0.0
    %256 = vmatpush1.msra.mxu0 0.0
    %257 = vmatprep.subr.mxu0 0.0
    %258 = vmatpush1.msra.mxu0 0.0
    %259 = vmatprep.subr.mxu0 0.0
    %260 = vmatpush1.msra.mxu0 0.0
    %261 = vmatprep.subr.mxu0 0.0
    %262 = vmatpush1.msra.mxu0 0.0
    %263 = vmatprep.subr.mxu0 0.0
    %264 = vmatpush1.msra.mxu0 0.0
    %265 = vmatprep.subr.mxu0 0.0
    %266 = vmatpush1.msra.mxu0 0.0
    %267 = vmatprep.subr.mxu0 0.0
    %268 = vmatpush1.msra.mxu0 0.0
    %269 = vmatprep.subr.mxu0 0.0
    %270 = vmatpush1.msra.mxu0 0.0
    %271 = vmatprep.subr.mxu0 0.0
    %272 = vmatpush1.msra.mxu0 0.0
    %273 = vmatprep.subr.mxu0 0.0
    %274 = vmatpush1.msra.mxu0 0.0
    %275 = vmatprep.subr.mxu0 0.0
    %276 = vmatpush1.msra.mxu0 0.0
    %277 = vmatprep.subr.mxu0 0.0
    %278 = vmatpush1.msra.mxu0 0.0
    %279 = vmatprep.subr.mxu0 0.0
    %280 = vmatpush1.msra.mxu0 0.0
    %281 = vmatprep.subr.mxu0 0.0
    %282 = vmatpush1.msra.mxu0 0.0
    %283 = vmatprep.subr.mxu0 0.0
    %284 = vmatpush1.msra.mxu0 0.0
    %285 = vmatprep.subr.mxu0 0.0
    %286 = vmatpush1.msra.mxu0 0.0
    %287 = vmatprep.subr.mxu0 0.0
    %288 = vmatpush1.msra.mxu0 0.0
    %289 = vmatprep.subr.mxu0 0.0
    %290 = vmatpush1.msra.mxu0 0.0
    %291 = vmatprep.subr.mxu0 0.0
    %292 = vmatpush1.msra.mxu0 0.0
    %293 = vmatprep.subr.mxu0 0.0
    %294 = vmatpush1.msra.mxu0 0.0
    %295 = vmatprep.subr.mxu0 0.0
    %296 = vmatpush1.msra.mxu0 0.0
    %297 = vmatprep.subr.mxu0 0.0
    %298 = vmatpush1.msra.mxu0 0.0
    %299 = vmatprep.subr.mxu0 0.0
    %300 = vmatpush1.msra.mxu0 0.0
    %301 = vmatprep.mubr.f32.mxu0 0.0
    %302 = vmatmul.mubr.f32.gmra.mrb[0].mxu0 %v219
    %v303 = vpop.f32.mrb[0].mxu0
    %v304 = vadd.f32 0.0, %v303
    %v305 = vpop.f32.mrb[0].mxu0
    %v306 = vadd.f32 0.0, %v305
    %307 = vmatprep.mubr.f32.mxu0 0.0
    %308 = vmatmul.mubr.f32.gmra.mrb[0].mxu0 %v222
    %v309 = vpop.f32.mrb[0].mxu0
    %v310 = vadd.f32 0.0, %v309
    %v311 = vpop.f32.mrb[0].mxu0
    %v312 = vadd.f32 0.0, %v311
    %313 = vdwg.mxu0
    %314 = vmatprep.subr.mxu0 %v198
    %315 = vmatpush1.msra.mxu0 %v197
    %316 = vmatprep.subr.mxu0 %v202
    %317 = vmatpush1.msra.mxu0 %v201
    %318 = vmatprep.subr.mxu0 %v235
    %319 = vmatpush1.msra.mxu0 %v232
    %320 = vmatprep.subr.mxu0 0.0
    %321 = vmatpush1.msra.mxu0 0.0
    %322 = vmatprep.subr.mxu0 0.0
    %323 = vmatpush1.msra.mxu0 0.0
    %324 = vmatprep.subr.mxu0 0.0
    %325 = vmatpush1.msra.mxu0 0.0
    %326 = vmatprep.subr.mxu0 0.0
    %327 = vmatpush1.msra.mxu0 0.0
    %328 = vmatprep.subr.mxu0 0.0
    %329 = vmatpush1.msra.mxu0 0.0
    %330 = vmatprep.subr.mxu0 0.0
    %331 = vmatpush1.msra.mxu0 0.0
    %332 = vmatprep.subr.mxu0 0.0
    %333 = vmatpush1.msra.mxu0 0.0
    %334 = vmatprep.subr.mxu0 0.0
    %335 = vmatpush1.msra.mxu0 0.0
    %336 = vmatprep.subr.mxu0 0.0
    %337 = vmatpush1.msra.mxu0 0.0
    %338 = vmatprep.subr.mxu0 0.0
    %339 = vmatpush1.msra.mxu0 0.0
    %340 = vmatprep.subr.mxu0 0.0
    %341 = vmatpush1.msra.mxu0 0.0
    %342 = vmatprep.subr.mxu0 0.0
    %343 = vmatpush1.msra.mxu0 0.0
    %344 = vmatprep.subr.mxu0 0.0
    %345 = vmatpush1.msra.mxu0 0.0
    %346 = vmatprep.subr.mxu0 0.0
    %347 = vmatpush1.msra.mxu0 0.0
    %348 = vmatprep.subr.mxu0 0.0
    %349 = vmatpush1.msra.mxu0 0.0
    %350 = vmatprep.subr.mxu0 0.0
    %351 = vmatpush1.msra.mxu0 0.0
    %352 = vmatprep.subr.mxu0 0.0
    %353 = vmatpush1.msra.mxu0 0.0
    %354 = vmatprep.subr.mxu0 0.0
    %355 = vmatpush1.msra.mxu0 0.0
    %356 = vmatprep.subr.mxu0 0.0
    %357 = vmatpush1.msra.mxu0 0.0
    %358 = vmatprep.subr.mxu0 0.0
    %359 = vmatpush1.msra.mxu0 0.0
    %360 = vmatprep.subr.mxu0 0.0
    %361 = vmatpush1.msra.mxu0 0.0
    %362 = vmatprep.subr.mxu0 0.0
    %363 = vmatpush1.msra.mxu0 0.0
    %364 = vmatprep.subr.mxu0 0.0
    %365 = vmatpush1.msra.mxu0 0.0
    %366 = vmatprep.subr.mxu0 0.0
    %367 = vmatpush1.msra.mxu0 0.0
    %368 = vmatprep.subr.mxu0 0.0
    %369 = vmatpush1.msra.mxu0 0.0
    %370 = vmatprep.subr.mxu0 0.0
    %371 = vmatpush1.msra.mxu0 0.0
    %372 = vmatprep.subr.mxu0 0.0
    %373 = vmatpush1.msra.mxu0 0.0
    %374 = vmatprep.subr.mxu0 0.0
    %375 = vmatpush1.msra.mxu0 0.0
    %376 = vmatprep.subr.mxu0 0.0
    %377 = vmatpush1.msra.mxu0 0.0
    %378 = vmatprep.mubr.f32.mxu0 0.0
    %379 = vmatmul.mubr.f32.gmra.mrb[0].mxu0 %v219
    %v380 = vpop.f32.mrb[0].mxu0
    %v381 = vadd.f32 0.0, %v380
    %v382 = vpop.f32.mrb[0].mxu0
    %v383 = vadd.f32 0.0, %v382
    %384 = vmatprep.mubr.f32.mxu0 0.0
    %385 = vmatmul.mubr.f32.gmra.mrb[0].mxu0 %v222
    %v386 = vpop.f32.mrb[0].mxu0
    %v387 = vadd.f32 0.0, %v386
    %v388 = vpop.f32.mrb[0].mxu0
    %v389 = vadd.f32 0.0, %v388
    %390 = vdwg.mxu0
    %v391 = vadd.f32 %v207, %v304
    %v392 = vadd.f32 %v208, %v306
    %v393 = vadd.f32 %v209, %v381
    %v394 = vadd.f32 %v210, %v383
    %v395 = vadd.f32 %v211, %v310
    %v396 = vadd.f32 %v212, %v312
    %v397 = vadd.f32 %v213, %v387
    %v398 = vadd.f32 %v214, %v389
    %v399 = vld [vmem:[%s3] sm:$0x1]
    %v400 = vld [vmem:[%s4] sm:$0x1]
    %402 = vset.pattern.permute.xlu0 0
    %403 = vperm.xlu0 %402, %v400
    %v404 = vpop.permute.xlu0 %403
    %v406 = vlaneseq
    %v407 = vshrl.u32 %v406, 7
    %v408 = vsub.s32 0, %v407
    %v409 = vrot.slane %v404, %v408
    %vm410 = vcmask 97280
    %v412 = vsel %vm410, %v399, 0
    %vm414 = vcmask 1043456
    %v416 = vsel %vm414, %v395, 0
    %v419 = vsel %vm414, %v396, 0
    %v422 = vsel %vm414, %v397, 0
    %v425 = vsel %vm414, %v398, 0
    %427 = vmatprep.subr.mxu0 %v392
    %428 = vmatpush1.msra.mxu0 %v391
    %429 = vmatprep.subr.mxu0 %v419
    %430 = vmatpush1.msra.mxu0 %v416
    %431 = vmatprep.subr.mxu0 0.0
    %432 = vmatpush1.msra.mxu0 0.0
    %433 = vmatprep.subr.mxu0 0.0
    %434 = vmatpush1.msra.mxu0 0.0
    %435 = vmatprep.subr.mxu0 0.0
    %436 = vmatpush1.msra.mxu0 0.0
    %437 = vmatprep.subr.mxu0 0.0
    %438 = vmatpush1.msra.mxu0 0.0
    %439 = vmatprep.subr.mxu0 0.0
    %440 = vmatpush1.msra.mxu0 0.0
    %441 = vmatprep.subr.mxu0 0.0
    %442 = vmatpush1.msra.mxu0 0.0
    %443 = vmatprep.subr.mxu0 0.0
    %444 = vmatpush1.msra.mxu0 0.0
    %445 = vmatprep.subr.mxu0 0.0
    %446 = vmatpush1.msra.mxu0 0.0
    %447 = vmatprep.subr.mxu0 0.0
    %448 = vmatpush1.msra.mxu0 0.0
    %449 = vmatprep.subr.mxu0 0.0
    %450 = vmatpush1.msra.mxu0 0.0
    %451 = vmatprep.subr.mxu0 0.0
    %452 = vmatpush1.msra.mxu0 0.0
    %453 = vmatprep.subr.mxu0 0.0
    %454 = vmatpush1.msra.mxu0 0.0
    %455 = vmatprep.subr.mxu0 0.0
    %456 = vmatpush1.msra.mxu0 0.0
    %457 = vmatprep.subr.mxu0 0.0
    %458 = vmatpush1.msra.mxu0 0.0
    %459 = vmatprep.subr.mxu0 0.0
    %460 = vmatpush1.msra.mxu0 0.0
    %461 = vmatprep.subr.mxu0 0.0
    %462 = vmatpush1.msra.mxu0 0.0
    %463 = vmatprep.subr.mxu0 0.0
    %464 = vmatpush1.msra.mxu0 0.0
    %465 = vmatprep.subr.mxu0 0.0
    %466 = vmatpush1.msra.mxu0 0.0
    %467 = vmatprep.subr.mxu0 0.0
    %468 = vmatpush1.msra.mxu0 0.0
    %469 = vmatprep.subr.mxu0 0.0
    %470 = vmatpush1.msra.mxu0 0.0
    %471 = vmatprep.subr.mxu0 0.0
    %472 = vmatpush1.msra.mxu0 0.0
    %473 = vmatprep.subr.mxu0 0.0
    %474 = vmatpush1.msra.mxu0 0.0
    %475 = vmatprep.subr.mxu0 0.0
    %476 = vmatpush1.msra.mxu0 0.0
    %477 = vmatprep.subr.mxu0 0.0
    %478 = vmatpush1.msra.mxu0 0.0
    %479 = vmatprep.subr.mxu0 0.0
    %480 = vmatpush1.msra.mxu0 0.0
    %481 = vmatprep.subr.mxu0 0.0
    %482 = vmatpush1.msra.mxu0 0.0
    %483 = vmatprep.subr.mxu0 0.0
    %484 = vmatpush1.msra.mxu0 0.0
    %485 = vmatprep.subr.mxu0 0.0
    %486 = vmatpush1.msra.mxu0 0.0
    %487 = vmatprep.subr.mxu0 0.0
    %488 = vmatpush1.msra.mxu0 0.0
    %489 = vmatprep.subr.mxu0 0.0
    %490 = vmatpush1.msra.mxu0 0.0
    %491 = vmatprep.mubr.f32.mxu0 0.0
    %492 = vmatmul.mubr.f32.gmra.mrb[0].mxu0 %v412
    %v493 = vpop.f32.mrb[0].mxu0
    %v494 = vadd.f32 %v409, %v493
    %v495 = vpop.f32.mrb[0].mxu0
    %v496 = vadd.f32 %v409, %v495
    %497 = vdwg.mxu0
    %498 = vmatprep.subr.mxu0 %v394
    %499 = vmatpush1.msra.mxu0 %v393
    %500 = vmatprep.subr.mxu0 %v425
    %501 = vmatpush1.msra.mxu0 %v422
    %502 = vmatprep.subr.mxu0 0.0
    %503 = vmatpush1.msra.mxu0 0.0
    %504 = vmatprep.subr.mxu0 0.0
    %505 = vmatpush1.msra.mxu0 0.0
    %506 = vmatprep.subr.mxu0 0.0
    %507 = vmatpush1.msra.mxu0 0.0
    %508 = vmatprep.subr.mxu0 0.0
    %509 = vmatpush1.msra.mxu0 0.0
    %510 = vmatprep.subr.mxu0 0.0
    %511 = vmatpush1.msra.mxu0 0.0
    %512 = vmatprep.subr.mxu0 0.0
    %513 = vmatpush1.msra.mxu0 0.0
    %514 = vmatprep.subr.mxu0 0.0
    %515 = vmatpush1.msra.mxu0 0.0
    %516 = vmatprep.subr.mxu0 0.0
    %517 = vmatpush1.msra.mxu0 0.0
    %518 = vmatprep.subr.mxu0 0.0
    %519 = vmatpush1.msra.mxu0 0.0
    %520 = vmatprep.subr.mxu0 0.0
    %521 = vmatpush1.msra.mxu0 0.0
    %522 = vmatprep.subr.mxu0 0.0
    %523 = vmatpush1.msra.mxu0 0.0
    %524 = vmatprep.subr.mxu0 0.0
    %525 = vmatpush1.msra.mxu0 0.0
    %526 = vmatprep.subr.mxu0 0.0
    %527 = vmatpush1.msra.mxu0 0.0
    %528 = vmatprep.subr.mxu0 0.0
    %529 = vmatpush1.msra.mxu0 0.0
    %530 = vmatprep.subr.mxu0 0.0
    %531 = vmatpush1.msra.mxu0 0.0
    %532 = vmatprep.subr.mxu0 0.0
    %533 = vmatpush1.msra.mxu0 0.0
    %534 = vmatprep.subr.mxu0 0.0
    %535 = vmatpush1.msra.mxu0 0.0
    %536 = vmatprep.subr.mxu0 0.0
    %537 = vmatpush1.msra.mxu0 0.0
    %538 = vmatprep.subr.mxu0 0.0
    %539 = vmatpush1.msra.mxu0 0.0
    %540 = vmatprep.subr.mxu0 0.0
    %541 = vmatpush1.msra.mxu0 0.0
    %542 = vmatprep.subr.mxu0 0.0
    %543 = vmatpush1.msra.mxu0 0.0
    %544 = vmatprep.subr.mxu0 0.0
    %545 = vmatpush1.msra.mxu0 0.0
    %546 = vmatprep.subr.mxu0 0.0
    %547 = vmatpush1.msra.mxu0 0.0
    %548 = vmatprep.subr.mxu0 0.0
    %549 = vmatpush1.msra.mxu0 0.0
    %550 = vmatprep.subr.mxu0 0.0
    %551 = vmatpush1.msra.mxu0 0.0
    %552 = vmatprep.subr.mxu0 0.0
    %553 = vmatpush1.msra.mxu0 0.0
    %554 = vmatprep.subr.mxu0 0.0
    %555 = vmatpush1.msra.mxu0 0.0
    %556 = vmatprep.subr.mxu0 0.0
    %557 = vmatpush1.msra.mxu0 0.0
    %558 = vmatprep.subr.mxu0 0.0
    %559 = vmatpush1.msra.mxu0 0.0
    %560 = vmatprep.subr.mxu0 0.0
    %561 = vmatpush1.msra.mxu0 0.0
    %562 = vmatprep.mubr.f32.mxu0 0.0
    %563 = vmatmul.mubr.f32.gmra.mrb[0].mxu0 %v412
    %v564 = vpop.f32.mrb[0].mxu0
    %v565 = vadd.f32 %v409, %v564
    %v566 = vpop.f32.mrb[0].mxu0
    %v567 = vadd.f32 %v409, %v566
    %568 = vdwg.mxu0
    %v569 = vlaneseq
    %v570 = vshrl.u32 %v569, 7
    %v571 = vsub.s32 0, %v570
    %v572 = vrot.slane %v494, %v571
    %v573 = vlaneseq
    %v574 = vshrl.u32 %v573, 7
    %v575 = vsub.s32 0, %v574
    %v576 = vrot.slane %v496, %v575
    %v577 = vlaneseq
    %v578 = vshrl.u32 %v577, 7
    %v579 = vsub.s32 0, %v578
    %v580 = vrot.slane %v565, %v579
    %v581 = vlaneseq
    %v582 = vshrl.u32 %v581, 7
    %v583 = vsub.s32 0, %v582
    %v584 = vrot.slane %v567, %v583
    %v585 = vadd.f32 %v391, %v572
    %v586 = vadd.f32 %v392, %v576
    %v587 = vadd.f32 %v393, %v580
    %v588 = vadd.f32 %v394, %v584
    %v589 = vadd.f32 %v395, %v572
    %v590 = vadd.f32 %v396, %v576
    %v591 = vadd.f32 %v397, %v580
    %v592 = vadd.f32 %v398, %v584
    %s593 = scalar_lea.vmem %s3, 1
    %v594 = vld [vmem:[%s593] sm:$0x1]
    %s595 = scalar_lea.vmem %s4, 1
    %v596 = vld [vmem:[%s595] sm:$0x1]
    %598 = vset.pattern.permute.xlu0 0
    %599 = vperm.xlu0 %598, %v596
    %v600 = vpop.permute.xlu0 %599
    %v602 = vlaneseq
    %v603 = vshrl.u32 %v602, 7
    %v604 = vsub.s32 0, %v603
    %v605 = vrot.slane %v600, %v604
    %v607 = vsel %vm410, %v594, 0
    %v610 = vsel %vm414, %v589, 0
    %v613 = vsel %vm414, %v590, 0
    %v616 = vsel %vm414, %v591, 0
    %v619 = vsel %vm414, %v592, 0
    %621 = vmatprep.subr.mxu0 %v586
    %622 = vmatpush1.msra.mxu0 %v585
    %623 = vmatprep.subr.mxu0 %v613
    %624 = vmatpush1.msra.mxu0 %v610
    %625 = vmatprep.subr.mxu0 0.0
    %626 = vmatpush1.msra.mxu0 0.0
    %627 = vmatprep.subr.mxu0 0.0
    %628 = vmatpush1.msra.mxu0 0.0
    %629 = vmatprep.subr.mxu0 0.0
    %630 = vmatpush1.msra.mxu0 0.0
    %631 = vmatprep.subr.mxu0 0.0
    %632 = vmatpush1.msra.mxu0 0.0
    %633 = vmatprep.subr.mxu0 0.0
    %634 = vmatpush1.msra.mxu0 0.0
    %635 = vmatprep.subr.mxu0 0.0
    %636 = vmatpush1.msra.mxu0 0.0
    %637 = vmatprep.subr.mxu0 0.0
    %638 = vmatpush1.msra.mxu0 0.0
    %639 = vmatprep.subr.mxu0 0.0
    %640 = vmatpush1.msra.mxu0 0.0
    %641 = vmatprep.subr.mxu0 0.0
    %642 = vmatpush1.msra.mxu0 0.0
    %643 = vmatprep.subr.mxu0 0.0
    %644 = vmatpush1.msra.mxu0 0.0
    %645 = vmatprep.subr.mxu0 0.0
    %646 = vmatpush1.msra.mxu0 0.0
    %647 = vmatprep.subr.mxu0 0.0
    %648 = vmatpush1.msra.mxu0 0.0
    %649 = vmatprep.subr.mxu0 0.0
    %650 = vmatpush1.msra.mxu0 0.0
    %651 = vmatprep.subr.mxu0 0.0
    %652 = vmatpush1.msra.mxu0 0.0
    %653 = vmatprep.subr.mxu0 0.0
    %654 = vmatpush1.msra.mxu0 0.0
    %655 = vmatprep.subr.mxu0 0.0
    %656 = vmatpush1.msra.mxu0 0.0
    %657 = vmatprep.subr.mxu0 0.0
    %658 = vmatpush1.msra.mxu0 0.0
    %659 = vmatprep.subr.mxu0 0.0
    %660 = vmatpush1.msra.mxu0 0.0
    %661 = vmatprep.subr.mxu0 0.0
    %662 = vmatpush1.msra.mxu0 0.0
    %663 = vmatprep.subr.mxu0 0.0
    %664 = vmatpush1.msra.mxu0 0.0
    %665 = vmatprep.subr.mxu0 0.0
    %666 = vmatpush1.msra.mxu0 0.0
    %667 = vmatprep.subr.mxu0 0.0
    %668 = vmatpush1.msra.mxu0 0.0
    %669 = vmatprep.subr.mxu0 0.0
    %670 = vmatpush1.msra.mxu0 0.0
    %671 = vmatprep.subr.mxu0 0.0
    %672 = vmatpush1.msra.mxu0 0.0
    %673 = vmatprep.subr.mxu0 0.0
    %674 = vmatpush1.msra.mxu0 0.0
    %675 = vmatprep.subr.mxu0 0.0
    %676 = vmatpush1.msra.mxu0 0.0
    %677 = vmatprep.subr.mxu0 0.0
    %678 = vmatpush1.msra.mxu0 0.0
    %679 = vmatprep.subr.mxu0 0.0
    %680 = vmatpush1.msra.mxu0 0.0
    %681 = vmatprep.subr.mxu0 0.0
    %682 = vmatpush1.msra.mxu0 0.0
    %683 = vmatprep.subr.mxu0 0.0
    %684 = vmatpush1.msra.mxu0 0.0
    %685 = vmatprep.mubr.f32.mxu0 0.0
    %686 = vmatmul.mubr.f32.gmra.mrb[0].mxu0 %v607
    %v687 = vpop.f32.mrb[0].mxu0
    %v688 = vadd.f32 %v605, %v687
    %v689 = vpop.f32.mrb[0].mxu0
    %v690 = vadd.f32 %v605, %v689
    %691 = vdwg.mxu0
    %692 = vmatprep.subr.mxu0 %v588
    %693 = vmatpush1.msra.mxu0 %v587
    %694 = vmatprep.subr.mxu0 %v619
    %695 = vmatpush1.msra.mxu0 %v616
    %696 = vmatprep.subr.mxu0 0.0
    %697 = vmatpush1.msra.mxu0 0.0
    %698 = vmatprep.subr.mxu0 0.0
    %699 = vmatpush1.msra.mxu0 0.0
    %700 = vmatprep.subr.mxu0 0.0
    %701 = vmatpush1.msra.mxu0 0.0
    %702 = vmatprep.subr.mxu0 0.0
    %703 = vmatpush1.msra.mxu0 0.0
    %704 = vmatprep.subr.mxu0 0.0
    %705 = vmatpush1.msra.mxu0 0.0
    %706 = vmatprep.subr.mxu0 0.0
    %707 = vmatpush1.msra.mxu0 0.0
    %708 = vmatprep.subr.mxu0 0.0
    %709 = vmatpush1.msra.mxu0 0.0
    %710 = vmatprep.subr.mxu0 0.0
    %711 = vmatpush1.msra.mxu0 0.0
    %712 = vmatprep.subr.mxu0 0.0
    %713 = vmatpush1.msra.mxu0 0.0
    %714 = vmatprep.subr.mxu0 0.0
    %715 = vmatpush1.msra.mxu0 0.0
    %716 = vmatprep.subr.mxu0 0.0
    %717 = vmatpush1.msra.mxu0 0.0
    %718 = vmatprep.subr.mxu0 0.0
    %719 = vmatpush1.msra.mxu0 0.0
    %720 = vmatprep.subr.mxu0 0.0
    %721 = vmatpush1.msra.mxu0 0.0
    %722 = vmatprep.subr.mxu0 0.0
    %723 = vmatpush1.msra.mxu0 0.0
    %724 = vmatprep.subr.mxu0 0.0
    %725 = vmatpush1.msra.mxu0 0.0
    %726 = vmatprep.subr.mxu0 0.0
    %727 = vmatpush1.msra.mxu0 0.0
    %728 = vmatprep.subr.mxu0 0.0
    %729 = vmatpush1.msra.mxu0 0.0
    %730 = vmatprep.subr.mxu0 0.0
    %731 = vmatpush1.msra.mxu0 0.0
    %732 = vmatprep.subr.mxu0 0.0
    %733 = vmatpush1.msra.mxu0 0.0
    %734 = vmatprep.subr.mxu0 0.0
    %735 = vmatpush1.msra.mxu0 0.0
    %736 = vmatprep.subr.mxu0 0.0
    %737 = vmatpush1.msra.mxu0 0.0
    %738 = vmatprep.subr.mxu0 0.0
    %739 = vmatpush1.msra.mxu0 0.0
    %740 = vmatprep.subr.mxu0 0.0
    %741 = vmatpush1.msra.mxu0 0.0
    %742 = vmatprep.subr.mxu0 0.0
    %743 = vmatpush1.msra.mxu0 0.0
    %744 = vmatprep.subr.mxu0 0.0
    %745 = vmatpush1.msra.mxu0 0.0
    %746 = vmatprep.subr.mxu0 0.0
    %747 = vmatpush1.msra.mxu0 0.0
    %748 = vmatprep.subr.mxu0 0.0
    %749 = vmatpush1.msra.mxu0 0.0
    %750 = vmatprep.subr.mxu0 0.0
    %751 = vmatpush1.msra.mxu0 0.0
    %752 = vmatprep.subr.mxu0 0.0
    %753 = vmatpush1.msra.mxu0 0.0
    %754 = vmatprep.subr.mxu0 0.0
    %755 = vmatpush1.msra.mxu0 0.0
    %756 = vmatprep.mubr.f32.mxu0 0.0
    %757 = vmatmul.mubr.f32.gmra.mrb[0].mxu0 %v607
    %v758 = vpop.f32.mrb[0].mxu0
    %v759 = vadd.f32 %v605, %v758
    %v760 = vpop.f32.mrb[0].mxu0
    %v761 = vadd.f32 %v605, %v760
    %762 = vdwg.mxu0
    %v763 = vlaneseq
    %v764 = vshrl.u32 %v763, 7
    %v765 = vsub.s32 0, %v764
    %v766 = vrot.slane %v688, %v765
    %v767 = vlaneseq
    %v768 = vshrl.u32 %v767, 7
    %v769 = vsub.s32 0, %v768
    %v770 = vrot.slane %v690, %v769
    %v771 = vlaneseq
    %v772 = vshrl.u32 %v771, 7
    %v773 = vsub.s32 0, %v772
    %v774 = vrot.slane %v759, %v773
    %v775 = vlaneseq
    %v776 = vshrl.u32 %v775, 7
    %v777 = vsub.s32 0, %v776
    %v778 = vrot.slane %v761, %v777
    %v779 = vadd.f32 %v585, %v766
    %v780 = vadd.f32 %v586, %v770
    %v781 = vadd.f32 %v587, %v774
    %v782 = vadd.f32 %v588, %v778
    %v783 = vadd.f32 %v589, %v766
    %v784 = vadd.f32 %v590, %v770
    %v785 = vadd.f32 %v591, %v774
    %v786 = vadd.f32 %v592, %v778
    %v787 = vld [vmem:[%s5] sm:$0xff]
    %v788 = vld [vmem:[%s5 + $0x8] sm:$0xff]
    %v789 = vld [vmem:[%s5 + $0x10] sm:$0xff]
    %v790 = vld [vmem:[%s5 + $0x18] sm:$0xff]
    %v791 = vld [vmem:[%s6] sm:$0xff]
    %v792 = vld [vmem:[%s6 + $0x8] sm:$0xff]
    %v793 = vld [vmem:[%s6 + $0x10] sm:$0xff]
    %v794 = vld [vmem:[%s6 + $0x18] sm:$0xff]
    %796 = vset.pattern.permute.xlu0 0
    %797 = vperm.xlu0 %796, %v791
    %v798 = vpop.permute.xlu0 %797
    %801 = vset.pattern.permute.xlu0 0
    %802 = vperm.xlu0 %801, %v792
    %v803 = vpop.permute.xlu0 %802
    %806 = vset.pattern.permute.xlu0 0
    %807 = vperm.xlu0 %806, %v793
    %v808 = vpop.permute.xlu0 %807
    %811 = vset.pattern.permute.xlu0 0
    %812 = vperm.xlu0 %811, %v794
    %v813 = vpop.permute.xlu0 %812
    %v816 = vsel %vm410, %v787, 0
    %v819 = vsel %vm410, %v788, 0
    %v822 = vsel %vm410, %v789, 0
    %v825 = vsel %vm410, %v790, 0
    %v828 = vsel %vm414, %v783, 0
    %v831 = vsel %vm414, %v784, 0
    %v834 = vsel %vm414, %v785, 0
    %v837 = vsel %vm414, %v786, 0
    %839 = vmatprep.subr.mxu0 %v780
    %840 = vmatpush1.msra.mxu0 %v779
    %841 = vmatprep.subr.mxu0 %v831
    %842 = vmatpush1.msra.mxu0 %v828
    %843 = vmatprep.subr.mxu0 0.0
    %844 = vmatpush1.msra.mxu0 0.0
    %845 = vmatprep.subr.mxu0 0.0
    %846 = vmatpush1.msra.mxu0 0.0
    %847 = vmatprep.subr.mxu0 0.0
    %848 = vmatpush1.msra.mxu0 0.0
    %849 = vmatprep.subr.mxu0 0.0
    %850 = vmatpush1.msra.mxu0 0.0
    %851 = vmatprep.subr.mxu0 0.0
    %852 = vmatpush1.msra.mxu0 0.0
    %853 = vmatprep.subr.mxu0 0.0
    %854 = vmatpush1.msra.mxu0 0.0
    %855 = vmatprep.subr.mxu0 0.0
    %856 = vmatpush1.msra.mxu0 0.0
    %857 = vmatprep.subr.mxu0 0.0
    %858 = vmatpush1.msra.mxu0 0.0
    %859 = vmatprep.subr.mxu0 0.0
    %860 = vmatpush1.msra.mxu0 0.0
    %861 = vmatprep.subr.mxu0 0.0
    %862 = vmatpush1.msra.mxu0 0.0
    %863 = vmatprep.subr.mxu0 0.0
    %864 = vmatpush1.msra.mxu0 0.0
    %865 = vmatprep.subr.mxu0 0.0
    %866 = vmatpush1.msra.mxu0 0.0
    %867 = vmatprep.subr.mxu0 0.0
    %868 = vmatpush1.msra.mxu0 0.0
    %869 = vmatprep.subr.mxu0 0.0
    %870 = vmatpush1.msra.mxu0 0.0
    %871 = vmatprep.subr.mxu0 0.0
    %872 = vmatpush1.msra.mxu0 0.0
    %873 = vmatprep.subr.mxu0 0.0
    %874 = vmatpush1.msra.mxu0 0.0
    %875 = vmatprep.subr.mxu0 0.0
    %876 = vmatpush1.msra.mxu0 0.0
    %877 = vmatprep.subr.mxu0 0.0
    %878 = vmatpush1.msra.mxu0 0.0
    %879 = vmatprep.subr.mxu0 0.0
    %880 = vmatpush1.msra.mxu0 0.0
    %881 = vmatprep.subr.mxu0 0.0
    %882 = vmatpush1.msra.mxu0 0.0
    %883 = vmatprep.subr.mxu0 0.0
    %884 = vmatpush1.msra.mxu0 0.0
    %885 = vmatprep.subr.mxu0 0.0
    %886 = vmatpush1.msra.mxu0 0.0
    %887 = vmatprep.subr.mxu0 0.0
    %888 = vmatpush1.msra.mxu0 0.0
    %889 = vmatprep.subr.mxu0 0.0
    %890 = vmatpush1.msra.mxu0 0.0
    %891 = vmatprep.subr.mxu0 0.0
    %892 = vmatpush1.msra.mxu0 0.0
    %893 = vmatprep.subr.mxu0 0.0
    %894 = vmatpush1.msra.mxu0 0.0
    %895 = vmatprep.subr.mxu0 0.0
    %896 = vmatpush1.msra.mxu0 0.0
    %897 = vmatprep.subr.mxu0 0.0
    %898 = vmatpush1.msra.mxu0 0.0
    %899 = vmatprep.subr.mxu0 0.0
    %900 = vmatpush1.msra.mxu0 0.0
    %901 = vmatprep.subr.mxu0 0.0
    %902 = vmatpush1.msra.mxu0 0.0
    %903 = vmatprep.mubr.f32.mxu0 0.0
    %904 = vmatmul.mubr.f32.gmra.mrb[0].mxu0 %v816
    %v905 = vpop.f32.mrb[0].mxu0
    %v906 = vadd.f32 %v798, %v905
    %v907 = vpop.f32.mrb[0].mxu0
    %v908 = vadd.f32 %v798, %v907
    %909 = vmatprep.mubr.f32.mxu0 0.0
    %910 = vmatmul.mubr.f32.gmra.mrb[0].mxu0 %v819
    %v911 = vpop.f32.mrb[0].mxu0
    %v912 = vadd.f32 %v803, %v911
    %v913 = vpop.f32.mrb[0].mxu0
    %v914 = vadd.f32 %v803, %v913
    %915 = vmatprep.mubr.f32.mxu0 0.0
    %916 = vmatmul.mubr.f32.gmra.mrb[0].mxu0 %v822
    %v917 = vpop.f32.mrb[0].mxu0
    %v918 = vadd.f32 %v808, %v917
    %v919 = vpop.f32.mrb[0].mxu0
    %v920 = vadd.f32 %v808, %v919
    %921 = vmatprep.mubr.f32.mxu0 0.0
    %922 = vmatmul.mubr.f32.gmra.mrb[0].mxu0 %v825
    %v923 = vpop.f32.mrb[0].mxu0
    %v924 = vadd.f32 %v813, %v923
    %v925 = vpop.f32.mrb[0].mxu0
    %v926 = vadd.f32 %v813, %v925
    %927 = vdwg.mxu0
    %928 = vmatprep.subr.mxu0 %v782
    %929 = vmatpush1.msra.mxu0 %v781
    %930 = vmatprep.subr.mxu0 %v837
    %931 = vmatpush1.msra.mxu0 %v834
    %932 = vmatprep.subr.mxu0 0.0
    %933 = vmatpush1.msra.mxu0 0.0
    %934 = vmatprep.subr.mxu0 0.0
    %935 = vmatpush1.msra.mxu0 0.0
    %936 = vmatprep.subr.mxu0 0.0
    %937 = vmatpush1.msra.mxu0 0.0
    %938 = vmatprep.subr.mxu0 0.0
    %939 = vmatpush1.msra.mxu0 0.0
    %940 = vmatprep.subr.mxu0 0.0
    %941 = vmatpush1.msra.mxu0 0.0
    %942 = vmatprep.subr.mxu0 0.0
    %943 = vmatpush1.msra.mxu0 0.0
    %944 = vmatprep.subr.mxu0 0.0
    %945 = vmatpush1.msra.mxu0 0.0
    %946 = vmatprep.subr.mxu0 0.0
    %947 = vmatpush1.msra.mxu0 0.0
    %948 = vmatprep.subr.mxu0 0.0
    %949 = vmatpush1.msra.mxu0 0.0
    %950 = vmatprep.subr.mxu0 0.0
    %951 = vmatpush1.msra.mxu0 0.0
    %952 = vmatprep.subr.mxu0 0.0
    %953 = vmatpush1.msra.mxu0 0.0
    %954 = vmatprep.subr.mxu0 0.0
    %955 = vmatpush1.msra.mxu0 0.0
    %956 = vmatprep.subr.mxu0 0.0
    %957 = vmatpush1.msra.mxu0 0.0
    %958 = vmatprep.subr.mxu0 0.0
    %959 = vmatpush1.msra.mxu0 0.0
    %960 = vmatprep.subr.mxu0 0.0
    %961 = vmatpush1.msra.mxu0 0.0
    %962 = vmatprep.subr.mxu0 0.0
    %963 = vmatpush1.msra.mxu0 0.0
    %964 = vmatprep.subr.mxu0 0.0
    %965 = vmatpush1.msra.mxu0 0.0
    %966 = vmatprep.subr.mxu0 0.0
    %967 = vmatpush1.msra.mxu0 0.0
    %968 = vmatprep.subr.mxu0 0.0
    %969 = vmatpush1.msra.mxu0 0.0
    %970 = vmatprep.subr.mxu0 0.0
    %971 = vmatpush1.msra.mxu0 0.0
    %972 = vmatprep.subr.mxu0 0.0
    %973 = vmatpush1.msra.mxu0 0.0
    %974 = vmatprep.subr.mxu0 0.0
    %975 = vmatpush1.msra.mxu0 0.0
    %976 = vmatprep.subr.mxu0 0.0
    %977 = vmatpush1.msra.mxu0 0.0
    %978 = vmatprep.subr.mxu0 0.0
    %979 = vmatpush1.msra.mxu0 0.0
    %980 = vmatprep.subr.mxu0 0.0
    %981 = vmatpush1.msra.mxu0 0.0
    %982 = vmatprep.subr.mxu0 0.0
    %983 = vmatpush1.msra.mxu0 0.0
    %984 = vmatprep.subr.mxu0 0.0
    %985 = vmatpush1.msra.mxu0 0.0
    %986 = vmatprep.subr.mxu0 0.0
    %987 = vmatpush1.msra.mxu0 0.0
    %988 = vmatprep.subr.mxu0 0.0
    %989 = vmatpush1.msra.mxu0 0.0
    %990 = vmatprep.subr.mxu0 0.0
    %991 = vmatpush1.msra.mxu0 0.0
    %992 = vmatprep.mubr.f32.mxu0 0.0
    %993 = vmatmul.mubr.f32.gmra.mrb[0].mxu0 %v816
    %v994 = vpop.f32.mrb[0].mxu0
    %v995 = vadd.f32 %v798, %v994
    %v996 = vpop.f32.mrb[0].mxu0
    %v997 = vadd.f32 %v798, %v996
    %998 = vmatprep.mubr.f32.mxu0 0.0
    %999 = vmatmul.mubr.f32.gmra.mrb[0].mxu0 %v819
    %v1000 = vpop.f32.mrb[0].mxu0
    %v1001 = vadd.f32 %v803, %v1000
    %v1002 = vpop.f32.mrb[0].mxu0
    %v1003 = vadd.f32 %v803, %v1002
    %1004 = vmatprep.mubr.f32.mxu0 0.0
    %1005 = vmatmul.mubr.f32.gmra.mrb[0].mxu0 %v822
    %v1006 = vpop.f32.mrb[0].mxu0
    %v1007 = vadd.f32 %v808, %v1006
    %v1008 = vpop.f32.mrb[0].mxu0
    %v1009 = vadd.f32 %v808, %v1008
    %1010 = vmatprep.mubr.f32.mxu0 0.0
    %1011 = vmatmul.mubr.f32.gmra.mrb[0].mxu0 %v825
    %v1012 = vpop.f32.mrb[0].mxu0
    %v1013 = vadd.f32 %v813, %v1012
    %v1014 = vpop.f32.mrb[0].mxu0
    %v1015 = vadd.f32 %v813, %v1014
    %1016 = vdwg.mxu0
    %v1017 = vmax.f32 %v906, 0.0
    %v1018 = vmax.f32 %v908, 0.0
    %v1019 = vmax.f32 %v995, 0.0
    %v1020 = vmax.f32 %v997, 0.0
    %v1021 = vmax.f32 %v912, 0.0
    %v1022 = vmax.f32 %v914, 0.0
    %v1023 = vmax.f32 %v1001, 0.0
    %v1024 = vmax.f32 %v1003, 0.0
    %v1025 = vmax.f32 %v918, 0.0
    %v1026 = vmax.f32 %v920, 0.0
    %v1027 = vmax.f32 %v1007, 0.0
    %v1028 = vmax.f32 %v1009, 0.0
    %v1029 = vmax.f32 %v924, 0.0
    %v1030 = vmax.f32 %v926, 0.0
    %v1031 = vmax.f32 %v1013, 0.0
    %v1032 = vmax.f32 %v1015, 0.0
    %v1033 = vld [vmem:[%s7] sm:$0xff]
    %v1034 = vld [vmem:[%s7 + $0x8] sm:$0xff]
    %v1035 = vld [vmem:[%s8] sm:$0xff]
    %v1036 = vld [vmem:[%s8 + $0x8] sm:$0xff]
    %1038 = vset.pattern.permute.xlu0 0
    %1039 = vperm.xlu0 %1038, %v1035
    %v1040 = vpop.permute.xlu0 %1039
    %1043 = vset.pattern.permute.xlu0 0
    %1044 = vperm.xlu0 %1043, %v1036
    %v1045 = vpop.permute.xlu0 %1044
    %vm1047 = vcmask 261120
    %v1049 = vsel %vm1047, %v1033, 0
    %v1052 = vsel %vm1047, %v1034, 0
    %1054 = vmatprep.subr.mxu0 %v1018
    %1055 = vmatpush1.msra.mxu0 %v1017
    %1056 = vmatprep.subr.mxu0 %v1022
    %1057 = vmatpush1.msra.mxu0 %v1021
    %1058 = vmatprep.subr.mxu0 %v1026
    %1059 = vmatpush1.msra.mxu0 %v1025
    %1060 = vmatprep.subr.mxu0 %v1030
    %1061 = vmatpush1.msra.mxu0 %v1029
    %1062 = vmatprep.subr.mxu0 0.0
    %1063 = vmatpush1.msra.mxu0 0.0
    %1064 = vmatprep.subr.mxu0 0.0
    %1065 = vmatpush1.msra.mxu0 0.0
    %1066 = vmatprep.subr.mxu0 0.0
    %1067 = vmatpush1.msra.mxu0 0.0
    %1068 = vmatprep.subr.mxu0 0.0
    %1069 = vmatpush1.msra.mxu0 0.0
    %1070 = vmatprep.subr.mxu0 0.0
    %1071 = vmatpush1.msra.mxu0 0.0
    %1072 = vmatprep.subr.mxu0 0.0
    %1073 = vmatpush1.msra.mxu0 0.0
    %1074 = vmatprep.subr.mxu0 0.0
    %1075 = vmatpush1.msra.mxu0 0.0
    %1076 = vmatprep.subr.mxu0 0.0
    %1077 = vmatpush1.msra.mxu0 0.0
    %1078 = vmatprep.subr.mxu0 0.0
    %1079 = vmatpush1.msra.mxu0 0.0
    %1080 = vmatprep.subr.mxu0 0.0
    %1081 = vmatpush1.msra.mxu0 0.0
    %1082 = vmatprep.subr.mxu0 0.0
    %1083 = vmatpush1.msra.mxu0 0.0
    %1084 = vmatprep.subr.mxu0 0.0
    %1085 = vmatpush1.msra.mxu0 0.0
    %1086 = vmatprep.subr.mxu0 0.0
    %1087 = vmatpush1.msra.mxu0 0.0
    %1088 = vmatprep.subr.mxu0 0.0
    %1089 = vmatpush1.msra.mxu0 0.0
    %1090 = vmatprep.subr.mxu0 0.0
    %1091 = vmatpush1.msra.mxu0 0.0
    %1092 = vmatprep.subr.mxu0 0.0
    %1093 = vmatpush1.msra.mxu0 0.0
    %1094 = vmatprep.subr.mxu0 0.0
    %1095 = vmatpush1.msra.mxu0 0.0
    %1096 = vmatprep.subr.mxu0 0.0
    %1097 = vmatpush1.msra.mxu0 0.0
    %1098 = vmatprep.subr.mxu0 0.0
    %1099 = vmatpush1.msra.mxu0 0.0
    %1100 = vmatprep.subr.mxu0 0.0
    %1101 = vmatpush1.msra.mxu0 0.0
    %1102 = vmatprep.subr.mxu0 0.0
    %1103 = vmatpush1.msra.mxu0 0.0
    %1104 = vmatprep.subr.mxu0 0.0
    %1105 = vmatpush1.msra.mxu0 0.0
    %1106 = vmatprep.subr.mxu0 0.0
    %1107 = vmatpush1.msra.mxu0 0.0
    %1108 = vmatprep.subr.mxu0 0.0
    %1109 = vmatpush1.msra.mxu0 0.0
    %1110 = vmatprep.subr.mxu0 0.0
    %1111 = vmatpush1.msra.mxu0 0.0
    %1112 = vmatprep.subr.mxu0 0.0
    %1113 = vmatpush1.msra.mxu0 0.0
    %1114 = vmatprep.subr.mxu0 0.0
    %1115 = vmatpush1.msra.mxu0 0.0
    %1116 = vmatprep.subr.mxu0 0.0
    %1117 = vmatpush1.msra.mxu0 0.0
    %1118 = vmatprep.mubr.f32.mxu0 0.0
    %1119 = vmatmul.mubr.f32.gmra.mrb[0].mxu0 %v1049
    %v1120 = vpop.f32.mrb[0].mxu0
    %v1121 = vadd.f32 %v1040, %v1120
    %v1122 = vpop.f32.mrb[0].mxu0
    %v1123 = vadd.f32 %v1040, %v1122
    %1124 = vmatprep.mubr.f32.mxu0 0.0
    %1125 = vmatmul.mubr.f32.gmra.mrb[0].mxu0 %v1052
    %v1126 = vpop.f32.mrb[0].mxu0
    %v1127 = vadd.f32 %v1045, %v1126
    %v1128 = vpop.f32.mrb[0].mxu0
    %v1129 = vadd.f32 %v1045, %v1128
    %1130 = vdwg.mxu0
    %1131 = vmatprep.subr.mxu0 %v1020
    %1132 = vmatpush1.msra.mxu0 %v1019
    %1133 = vmatprep.subr.mxu0 %v1024
    %1134 = vmatpush1.msra.mxu0 %v1023
    %1135 = vmatprep.subr.mxu0 %v1028
    %1136 = vmatpush1.msra.mxu0 %v1027
    %1137 = vmatprep.subr.mxu0 %v1032
    %1138 = vmatpush1.msra.mxu0 %v1031
    %1139 = vmatprep.subr.mxu0 0.0
    %1140 = vmatpush1.msra.mxu0 0.0
    %1141 = vmatprep.subr.mxu0 0.0
    %1142 = vmatpush1.msra.mxu0 0.0
    %1143 = vmatprep.subr.mxu0 0.0
    %1144 = vmatpush1.msra.mxu0 0.0
    %1145 = vmatprep.subr.mxu0 0.0
    %1146 = vmatpush1.msra.mxu0 0.0
    %1147 = vmatprep.subr.mxu0 0.0
    %1148 = vmatpush1.msra.mxu0 0.0
    %1149 = vmatprep.subr.mxu0 0.0
    %1150 = vmatpush1.msra.mxu0 0.0
    %1151 = vmatprep.subr.mxu0 0.0
    %1152 = vmatpush1.msra.mxu0 0.0
    %1153 = vmatprep.subr.mxu0 0.0
    %1154 = vmatpush1.msra.mxu0 0.0
    %1155 = vmatprep.subr.mxu0 0.0
    %1156 = vmatpush1.msra.mxu0 0.0
    %1157 = vmatprep.subr.mxu0 0.0
    %1158 = vmatpush1.msra.mxu0 0.0
    %1159 = vmatprep.subr.mxu0 0.0
    %1160 = vmatpush1.msra.mxu0 0.0
    %1161 = vmatprep.subr.mxu0 0.0
    %1162 = vmatpush1.msra.mxu0 0.0
    %1163 = vmatprep.subr.mxu0 0.0
    %1164 = vmatpush1.msra.mxu0 0.0
    %1165 = vmatprep.subr.mxu0 0.0
    %1166 = vmatpush1.msra.mxu0 0.0
    %1167 = vmatprep.subr.mxu0 0.0
    %1168 = vmatpush1.msra.mxu0 0.0
    %1169 = vmatprep.subr.mxu0 0.0
    %1170 = vmatpush1.msra.mxu0 0.0
    %1171 = vmatprep.subr.mxu0 0.0
    %1172 = vmatpush1.msra.mxu0 0.0
    %1173 = vmatprep.subr.mxu0 0.0
    %1174 = vmatpush1.msra.mxu0 0.0
    %1175 = vmatprep.subr.mxu0 0.0
    %1176 = vmatpush1.msra.mxu0 0.0
    %1177 = vmatprep.subr.mxu0 0.0
    %1178 = vmatpush1.msra.mxu0 0.0
    %1179 = vmatprep.subr.mxu0 0.0
    %1180 = vmatpush1.msra.mxu0 0.0
    %1181 = vmatprep.subr.mxu0 0.0
    %1182 = vmatpush1.msra.mxu0 0.0
    %1183 = vmatprep.subr.mxu0 0.0
    %1184 = vmatpush1.msra.mxu0 0.0
    %1185 = vmatprep.subr.mxu0 0.0
    %1186 = vmatpush1.msra.mxu0 0.0
    %1187 = vmatprep.subr.mxu0 0.0
    %1188 = vmatpush1.msra.mxu0 0.0
    %1189 = vmatprep.subr.mxu0 0.0
    %1190 = vmatpush1.msra.mxu0 0.0
    %1191 = vmatprep.subr.mxu0 0.0
    %1192 = vmatpush1.msra.mxu0 0.0
    %1193 = vmatprep.subr.mxu0 0.0
    %1194 = vmatpush1.msra.mxu0 0.0
    %1195 = vmatprep.mubr.f32.mxu0 0.0
    %1196 = vmatmul.mubr.f32.gmra.mrb[0].mxu0 %v1049
    %v1197 = vpop.f32.mrb[0].mxu0
    %v1198 = vadd.f32 %v1040, %v1197
    %v1199 = vpop.f32.mrb[0].mxu0
    %v1200 = vadd.f32 %v1040, %v1199
    %1201 = vmatprep.mubr.f32.mxu0 0.0
    %1202 = vmatmul.mubr.f32.gmra.mrb[0].mxu0 %v1052
    %v1203 = vpop.f32.mrb[0].mxu0
    %v1204 = vadd.f32 %v1045, %v1203
    %v1205 = vpop.f32.mrb[0].mxu0
    %v1206 = vadd.f32 %v1045, %v1205
    %1207 = vdwg.mxu0
    %v1208 = vmax.f32 %v1121, 0.0
    %v1209 = vmax.f32 %v1123, 0.0
    %v1210 = vmax.f32 %v1198, 0.0
    %v1211 = vmax.f32 %v1200, 0.0
    %v1212 = vmax.f32 %v1127, 0.0
    %v1213 = vmax.f32 %v1129, 0.0
    %v1214 = vmax.f32 %v1204, 0.0
    %v1215 = vmax.f32 %v1206, 0.0
    %v1216 = vld [vmem:[%s9] sm:$0x1]
    %v1217 = vld [vmem:[#allocation2] sm:$0x1]
    %1219 = vset.pattern.permute.xlu0 0
    %1220 = vperm.xlu0 %1219, %v1217
    %v1221 = vpop.permute.xlu0 %1220
    %v1223 = vlaneseq
    %v1224 = vshrl.u32 %v1223, 7
    %v1225 = vsub.s32 0, %v1224
    %v1226 = vrot.slane %v1221, %v1225
    %vm1227 = vcmask 130048
    %v1229 = vsel %vm1227, %v1216, 0
    %1231 = vmatprep.subr.mxu0 %v1209
    %1232 = vmatpush1.msra.mxu0 %v1208
    %1233 = vmatprep.subr.mxu0 %v1213
    %1234 = vmatpush1.msra.mxu0 %v1212
    %1235 = vmatprep.subr.mxu0 0.0
    %1236 = vmatpush1.msra.mxu0 0.0
    %1237 = vmatprep.subr.mxu0 0.0
    %1238 = vmatpush1.msra.mxu0 0.0
    %1239 = vmatprep.subr.mxu0 0.0
    %1240 = vmatpush1.msra.mxu0 0.0
    %1241 = vmatprep.subr.mxu0 0.0
    %1242 = vmatpush1.msra.mxu0 0.0
    %1243 = vmatprep.subr.mxu0 0.0
    %1244 = vmatpush1.msra.mxu0 0.0
    %1245 = vmatprep.subr.mxu0 0.0
    %1246 = vmatpush1.msra.mxu0 0.0
    %1247 = vmatprep.subr.mxu0 0.0
    %1248 = vmatpush1.msra.mxu0 0.0
    %1249 = vmatprep.subr.mxu0 0.0
    %1250 = vmatpush1.msra.mxu0 0.0
    %1251 = vmatprep.subr.mxu0 0.0
    %1252 = vmatpush1.msra.mxu0 0.0
    %1253 = vmatprep.subr.mxu0 0.0
    %1254 = vmatpush1.msra.mxu0 0.0
    %1255 = vmatprep.subr.mxu0 0.0
    %1256 = vmatpush1.msra.mxu0 0.0
    %1257 = vmatprep.subr.mxu0 0.0
    %1258 = vmatpush1.msra.mxu0 0.0
    %1259 = vmatprep.subr.mxu0 0.0
    %1260 = vmatpush1.msra.mxu0 0.0
    %1261 = vmatprep.subr.mxu0 0.0
    %1262 = vmatpush1.msra.mxu0 0.0
    %1263 = vmatprep.subr.mxu0 0.0
    %1264 = vmatpush1.msra.mxu0 0.0
    %1265 = vmatprep.subr.mxu0 0.0
    %1266 = vmatpush1.msra.mxu0 0.0
    %1267 = vmatprep.subr.mxu0 0.0
    %1268 = vmatpush1.msra.mxu0 0.0
    %1269 = vmatprep.subr.mxu0 0.0
    %1270 = vmatpush1.msra.mxu0 0.0
    %1271 = vmatprep.subr.mxu0 0.0
    %1272 = vmatpush1.msra.mxu0 0.0
    %1273 = vmatprep.subr.mxu0 0.0
    %1274 = vmatpush1.msra.mxu0 0.0
    %1275 = vmatprep.subr.mxu0 0.0
    %1276 = vmatpush1.msra.mxu0 0.0
    %1277 = vmatprep.subr.mxu0 0.0
    %1278 = vmatpush1.msra.mxu0 0.0
    %1279 = vmatprep.subr.mxu0 0.0
    %1280 = vmatpush1.msra.mxu0 0.0
    %1281 = vmatprep.subr.mxu0 0.0
    %1282 = vmatpush1.msra.mxu0 0.0
    %1283 = vmatprep.subr.mxu0 0.0
    %1284 = vmatpush1.msra.mxu0 0.0
    %1285 = vmatprep.subr.mxu0 0.0
    %1286 = vmatpush1.msra.mxu0 0.0
    %1287 = vmatprep.subr.mxu0 0.0
    %1288 = vmatpush1.msra.mxu0 0.0
    %1289 = vmatprep.subr.mxu0 0.0
    %1290 = vmatpush1.msra.mxu0 0.0
    %1291 = vmatprep.subr.mxu0 0.0
    %1292 = vmatpush1.msra.mxu0 0.0
    %1293 = vmatprep.subr.mxu0 0.0
    %1294 = vmatpush1.msra.mxu0 0.0
    %1295 = vmatprep.mubr.f32.mxu0 0.0
    %1296 = vmatmul.mubr.f32.gmra.mrb[0].mxu0 %v1229
    %v1297 = vpop.f32.mrb[0].mxu0
    %v1298 = vadd.f32 %v1226, %v1297
    %v1299 = vpop.f32.mrb[0].mxu0
    %v1300 = vadd.f32 %v1226, %v1299
    %1301 = vdwg.mxu0
    %1302 = vmatprep.subr.mxu0 %v1211
    %1303 = vmatpush1.msra.mxu0 %v1210
    %1304 = vmatprep.subr.mxu0 %v1215
    %1305 = vmatpush1.msra.mxu0 %v1214
    %1306 = vmatprep.subr.mxu0 0.0
    %1307 = vmatpush1.msra.mxu0 0.0
    %1308 = vmatprep.subr.mxu0 0.0
    %1309 = vmatpush1.msra.mxu0 0.0
    %1310 = vmatprep.subr.mxu0 0.0
    %1311 = vmatpush1.msra.mxu0 0.0
    %1312 = vmatprep.subr.mxu0 0.0
    %1313 = vmatpush1.msra.mxu0 0.0
    %1314 = vmatprep.subr.mxu0 0.0
    %1315 = vmatpush1.msra.mxu0 0.0
    %1316 = vmatprep.subr.mxu0 0.0
    %1317 = vmatpush1.msra.mxu0 0.0
    %1318 = vmatprep.subr.mxu0 0.0
    %1319 = vmatpush1.msra.mxu0 0.0
    %1320 = vmatprep.subr.mxu0 0.0
    %1321 = vmatpush1.msra.mxu0 0.0
    %1322 = vmatprep.subr.mxu0 0.0
    %1323 = vmatpush1.msra.mxu0 0.0
    %1324 = vmatprep.subr.mxu0 0.0
    %1325 = vmatpush1.msra.mxu0 0.0
    %1326 = vmatprep.subr.mxu0 0.0
    %1327 = vmatpush1.msra.mxu0 0.0
    %1328 = vmatprep.subr.mxu0 0.0
    %1329 = vmatpush1.msra.mxu0 0.0
    %1330 = vmatprep.subr.mxu0 0.0
    %1331 = vmatpush1.msra.mxu0 0.0
    %1332 = vmatprep.subr.mxu0 0.0
    %1333 = vmatpush1.msra.mxu0 0.0
    %1334 = vmatprep.subr.mxu0 0.0
    %1335 = vmatpush1.msra.mxu0 0.0
    %1336 = vmatprep.subr.mxu0 0.0
    %1337 = vmatpush1.msra.mxu0 0.0
    %1338 = vmatprep.subr.mxu0 0.0
    %1339 = vmatpush1.msra.mxu0 0.0
    %1340 = vmatprep.subr.mxu0 0.0
    %1341 = vmatpush1.msra.mxu0 0.0
    %1342 = vmatprep.subr.mxu0 0.0
    %1343 = vmatpush1.msra.mxu0 0.0
    %1344 = vmatprep.subr.mxu0 0.0
    %1345 = vmatpush1.msra.mxu0 0.0
    %1346 = vmatprep.subr.mxu0 0.0
    %1347 = vmatpush1.msra.mxu0 0.0
    %1348 = vmatprep.subr.mxu0 0.0
    %1349 = vmatpush1.msra.mxu0 0.0
    %1350 = vmatprep.subr.mxu0 0.0
    %1351 = vmatpush1.msra.mxu0 0.0
    %1352 = vmatprep.subr.mxu0 0.0
    %1353 = vmatpush1.msra.mxu0 0.0
    %1354 = vmatprep.subr.mxu0 0.0
    %1355 = vmatpush1.msra.mxu0 0.0
    %1356 = vmatprep.subr.mxu0 0.0
    %1357 = vmatpush1.msra.mxu0 0.0
    %1358 = vmatprep.subr.mxu0 0.0
    %1359 = vmatpush1.msra.mxu0 0.0
    %1360 = vmatprep.subr.mxu0 0.0
    %1361 = vmatpush1.msra.mxu0 0.0
    %1362 = vmatprep.subr.mxu0 0.0
    %1363 = vmatpush1.msra.mxu0 0.0
    %1364 = vmatprep.subr.mxu0 0.0
    %1365 = vmatpush1.msra.mxu0 0.0
    %1366 = vmatprep.mubr.f32.mxu0 0.0
    %1367 = vmatmul.mubr.f32.gmra.mrb[0].mxu0 %v1229
    %v1368 = vpop.f32.mrb[0].mxu0
    %v1369 = vadd.f32 %v1226, %v1368
    %v1370 = vpop.f32.mrb[0].mxu0
    %v1371 = vadd.f32 %v1226, %v1370
    %1372 = vdwg.mxu0
    %v1373 = vxor.u32 %v1298, 2147483648
    %v1374 = vxor.u32 %v1300, 2147483648
    %v1375 = vxor.u32 %v1369, 2147483648
    %v1376 = vxor.u32 %v1371, 2147483648
    %v1377 = vmul.f32 %v1373, 1.442695
    %v1378 = vpow.pop %v1377
    %v1379 = vmul.f32 %v1374, 1.442695
    %v1380 = vpow.pop %v1379
    %v1381 = vmul.f32 %v1375, 1.442695
    %v1382 = vpow.pop %v1381
    %v1383 = vmul.f32 %v1376, 1.442695
    %v1384 = vpow.pop %v1383
    %v1385 = vadd.f32 %v1378, 1.0
    %v1386 = vadd.f32 %v1380, 1.0
    %v1387 = vadd.f32 %v1382, 1.0
    %v1388 = vadd.f32 %v1384, 1.0
    %v1389 = vrcp.pop %v1385
    %v1390 = vmul.f32 1.0, %v1389
    %v1391 = vrcp.pop %v1386
    %v1392 = vmul.f32 1.0, %v1391
    %v1393 = vrcp.pop %v1387
    %v1394 = vmul.f32 1.0, %v1393
    %v1395 = vrcp.pop %v1388
    %v1396 = vmul.f32 1.0, %v1395
    %v1401 = vcombine.low %v1390, %v1392
    %v1402 = vcombine.low %v1394, %v1396
    %v1404 = vunpack.c.l.s4 1966171168
    %v1405 = vunpack.c.0.s8 %v1404
    %v1406 = vlaneseq
    %v1407 = vshrl.u32 %v1406, 7
    %v1408 = vsub.s32 %v1405, %v1407
    %v1409 = vrot.slane %v1401, %v1408
    %v1411 = vunpack.c.l.s4 1966171168
    %v1412 = vunpack.c.0.s8 %v1411
    %v1413 = vlaneseq
    %v1414 = vshrl.u32 %v1413, 7
    %v1415 = vsub.s32 %v1412, %v1414
    %v1416 = vrot.slane %v1402, %v1415
    %v1417 = vcombine.low %v1409, %v1416
    %v1419 = vunpack.c.l.s4 1966171168
    %v1420 = vunpack.c.0.s8 %v1419
    %v1421 = vlaneseq
    %v1422 = vshrl.u32 %v1421, 7
    %v1423 = vsub.s32 %v1420, %v1422
    %v1424 = vrot.slane %v1417, %v1423
    %v1426 = vlaneseq
    %vm1427 = vcmp.ge.s32.totalorder %v1426, 0
    %vm1428 = vcmp.lt.s32.totalorder %v1426, 512
    %vm1429 = vmand %vm1427, %vm1428
    %1430 = vst.msk [vmem:[#allocation6] sm:$0xf] %vm1429, %v1424
    // Predicated region
    $region50: #{tpu_custom_call.1} parent=1 // pred_check
      _
    $region51: #{tpu_custom_call.1} parent=1 // pred_check_branch
      %1432 = sbr.rel (0) target = $region53
    $region52: #{tpu_custom_call.1} parent=1 // pred_region
      %s1434 = ssub.s32 64, 64
      %1435 = vsyncadd [#allocation5], %s1434
      %s1437 = sshll.u32 [#allocation6], 4
      %s1438 = int_to_ptr.vmem [resolvable:$true] %s1437
      %1440 = dma.vmem_to_hbm [thread:$0]  %s1438, 64, %s11, [#allocation5]
    $region53: #{tpu_custom_call.1} parent=1 // pred_fallthru
      _
    // Predicated region
    $region54: #{tpu_custom_call.1} parent=1 // pred_check
      _
    $region55: #{tpu_custom_call.1} parent=1 // pred_check_branch
      %1442 = sbr.rel (0) target = $region57
    $region56: #{tpu_custom_call.1} parent=1 // pred_region
      %1443 = dma.done [#allocation5], 64
    $region57: #{tpu_custom_call.1} parent=1 // pred_fallthru
      _
    %1444 = vsyncpa [#allocation4], 1
    %1445 = vsyncpa [#allocation5], 1

</llo_original>
